<compile_context>
chip_gen: v7x
topology: tpu7x:2x2x1
jax: 0.10.0
libtpu: 0.0.40
codegen_flags: <defaults>
</compile_context>

<pallas_src>
import functools

import jax
import jax.numpy as jnp
from jax.experimental import pallas as pl
from jax.experimental.pallas import tpu as pltpu


def _round_up(x, m):
    return (x + m - 1) // m * m


def _pad2(a, rows, cols):
    """Zero-pad a 2-D array up to (rows, cols)."""
    out = jnp.zeros((rows, cols), a.dtype)
    return out.at[: a.shape[0], : a.shape[1]].set(a)


# ----------------------------------------------------------------------------
# Fused per-layer kernel: GIN layer + BN + global_add_pool + proj-head fold.
# Grid axis 0 = GIN layer index (sequential / "arbitrary").
# ----------------------------------------------------------------------------
def _simclr_layer_kernel(n_real, eps,
                         agg_ref, x_ref,
                         w1_ref, b1_ref, w2_ref, b2_ref,
                         gamma_ref, beta_ref,
                         pool_ref, wp1_ref, bp1_ref, wp2_ref, bp2_ref,
                         out_ref,
                         h_ref, y1_ref):
    f32 = jnp.float32
    bf16 = jnp.bfloat16

    layer = pl.program_id(0)
    n_layers = pl.num_programs(0)
    n_pad = agg_ref.shape[0]

    # ---- init on first layer: load node features, zero proj-Linear-1 acc ----
    @pl.when(layer == 0)
    def _():
        h_ref[...] = x_ref[...]
        y1_ref[...] = jnp.zeros_like(y1_ref)

    # Row mask over real nodes (padded rows excluded from BN stats / zeroed).
    row_mask = (jax.lax.broadcasted_iota(jnp.int32, (n_pad, 1), 0) < n_real).astype(f32)
    inv_n = 1.0 / float(n_real)

    h = h_ref[...]                                              # [NP, DP] bf16

    # GIN aggregation (eps = 0): (I + A) @ h   -- MXU bf16, f32 acc.
    agg = jnp.dot(agg_ref[...], h, preferred_element_type=f32)
    # GIN MLP: Linear -> ReLU -> Linear, fused with the outer ReLU.
    h1 = jnp.maximum(
        jnp.dot(agg.astype(bf16), w1_ref[0], preferred_element_type=f32) + b1_ref[0],
        0.0)
    h2 = jnp.maximum(
        jnp.dot(h1.astype(bf16), w2_ref[0], preferred_element_type=f32) + b2_ref[0],
        0.0)

    # BatchNorm1d (training mode, biased variance), stats over real rows only.
    # Single masked pass: E[x^2] - E[x]^2 (row_mask broadcast materialized once).
    h2m = h2 * row_mask
    mean = jnp.sum(h2m, axis=0, keepdims=True) * inv_n
    ex2 = jnp.sum(h2m * h2m, axis=0, keepdims=True) * inv_n
    var = jnp.maximum(ex2 - mean * mean, 0.0)
    inv_std = jax.lax.rsqrt(var + eps)
    # Padded rows zeroed so the carried h stays exact for the next layer.
    hbn = ((h2 - mean) * inv_std * gamma_ref[0] + beta_ref[0]) * row_mask   # [NP, DP] f32
    hbn_bf = hbn.astype(bf16)

    # global_add_pool + matching row-block of proj-head Linear 1, fused:
    #   cat(pooled_l) @ Wp1 == sum_l pooled_l @ Wp1[l-th block]
    pooled = jnp.dot(pool_ref[...], hbn_bf, preferred_element_type=f32)     # [GP, DP]
    y1_ref[...] += jnp.dot(pooled.astype(bf16), wp1_ref[0],
                           preferred_element_type=f32)

    # Carry normalized features into the next layer.
    h_ref[...] = hbn_bf

    # ---- finalize on last layer: projection head Linear -> ReLU -> Linear ----
    @pl.when(layer == n_layers - 1)
    def _():
        y1 = jnp.maximum(y1_ref[...] + bp1_ref[...], 0.0)
        out_ref[...] = (jnp.dot(y1.astype(bf16), wp2_ref[...],
                                preferred_element_type=f32) + bp2_ref[...])


# ----------------------------------------------------------------------------
# Parameter init (deterministic, mirrors init_emb: xavier_uniform weights, 0 bias)
# ----------------------------------------------------------------------------
def _xavier_uniform(key, fan_in, fan_out):
    limit = (6.0 / (fan_in + fan_out)) ** 0.5
    # Stored as [in, out]; out = x @ W  (equivalent to PyTorch x @ W.T).
    return jax.random.uniform(key, (fan_in, fan_out), jnp.float32, -limit, limit)


def init_simclr_params(key, num_features, hidden_dim, num_gc_layers):
    params = {"gin": [], "bn": [], "proj": None}
    for layer in range(num_gc_layers):
        in_dim = num_features if layer == 0 else hidden_dim
        key, k1, k2 = jax.random.split(key, 3)
        w1 = _xavier_uniform(k1, in_dim, hidden_dim)
        b1 = jnp.zeros((hidden_dim,), jnp.float32)
        w2 = _xavier_uniform(k2, hidden_dim, hidden_dim)
        b2 = jnp.zeros((hidden_dim,), jnp.float32)
        params["gin"].append((w1, b1, w2, b2))
        params["bn"].append(
            (jnp.ones((hidden_dim,), jnp.float32), jnp.zeros((hidden_dim,), jnp.float32))
        )
    emb = hidden_dim * num_gc_layers
    key, k1, k2 = jax.random.split(key, 3)
    params["proj"] = (
        _xavier_uniform(k1, emb, emb),
        jnp.zeros((emb,), jnp.float32),
        _xavier_uniform(k2, emb, emb),
        jnp.zeros((emb,), jnp.float32),
    )
    return params


# ----------------------------------------------------------------------------
# simclr.forward
# ----------------------------------------------------------------------------
def simclr_forward(params, x, edge_index, batch, num_graphs):
    n_nodes, num_features = x.shape
    num_layers = len(params["gin"])
    hidden = params["gin"][0][0].shape[1]
    emb = hidden * num_layers

    # Lane/sublane/MXU-aligned padded sizes.
    NP = _round_up(max(n_nodes, 128), 128)                 # node rows (MXU M dim)
    DP = _round_up(max(num_features, hidden, 128), 128)    # feature width (lane-dense)
    EP = _round_up(max(emb, 128), 128)                     # embedding width (lane-dense)
    GP = _round_up(max(num_graphs, 8), 8)                  # graphs (f32 sublanes)

    # --- glue: dense (I + A) aggregation matrix and one-hot pooling matrix ---
    # TODO(synk): swap for a CSR neighbor-gather path for large graphs.
    adj = jnp.zeros((NP, NP), jnp.float32)
    adj = adj.at[edge_index[1], edge_index[0]].add(1.0)    # A[dst, src] += 1
    agg_mat = (adj + jnp.eye(NP, dtype=jnp.float32)).astype(jnp.bfloat16)
    pool = (batch[None, :] == jnp.arange(num_graphs)[:, None]).astype(jnp.bfloat16)
    pool_mat = jnp.zeros((GP, NP), jnp.bfloat16).at[:num_graphs, :n_nodes].set(pool)

    # --- glue: zero-pad inputs / parameters to aligned shapes (one-time) ---
    x_p = _pad2(x.astype(jnp.float32), NP, DP).astype(jnp.bfloat16)

    w1_s, b1_s, w2_s, b2_s, g_s, be_s = [], [], [], [], [], []
    for (w1, b1, w2, b2), (gamma, beta) in zip(params["gin"], params["bn"]):
        w1_s.append(_pad2(w1, DP, DP))
        w2_s.append(_pad2(w2, DP, DP))
        b1_s.append(_pad2(b1.reshape(1, -1), 1, DP))
        b2_s.append(_pad2(b2.reshape(1, -1), 1, DP))
        g_s.append(_pad2(gamma.reshape(1, -1), 1, DP))
        be_s.append(_pad2(beta.reshape(1, -1), 1, DP))
    w1_s = jnp.stack(w1_s).astype(jnp.bfloat16)            # [L, DP, DP]
    w2_s = jnp.stack(w2_s).astype(jnp.bfloat16)            # [L, DP, DP]
    b1_s = jnp.stack(b1_s)                                  # [L, 1, DP] f32
    b2_s = jnp.stack(b2_s)
    g_s = jnp.stack(g_s)
    be_s = jnp.stack(be_s)

    wp1, bp1, wp2, bp2 = params["proj"]
    # Split proj Linear-1 rows by source layer so the kernel can fuse
    # pool-then-project without materializing the concatenated embedding.
    wp1_s = jnp.stack([
        _pad2(wp1[l * hidden:(l + 1) * hidden, :], DP, EP) for l in range(num_layers)
    ]).astype(jnp.bfloat16)                                 # [L, DP, EP]
    bp1_p = _pad2(bp1.reshape(1, -1), 1, EP)
    wp2_p = _pad2(wp2, EP, EP).astype(jnp.bfloat16)
    bp2_p = _pad2(bp2.reshape(1, -1), 1, EP)

    kernel = functools.partial(_simclr_layer_kernel, n_nodes, 1e-5)

    # Advisory cost estimate for XLA scheduling around the fused kernel.
    flops = num_layers * (2 * NP * NP * DP          # aggregation
                          + 2 * 2 * NP * DP * DP    # GIN MLP (two linears)
                          + 2 * GP * NP * DP        # pooling
                          + 2 * GP * DP * EP)       # proj Linear-1 row block
    flops += 2 * GP * EP * EP                       # proj Linear-2
    bytes_accessed = (
        NP * NP * 2 + NP * DP * 2 + GP * NP * 2                 # agg, x, pool (bf16)
        + num_layers * (2 * DP * DP * 2 + DP * EP * 2)          # w1/w2/wp1 (bf16)
        + num_layers * 4 * DP * 4                               # b1/b2/gamma/beta (f32)
        + EP * EP * 2 + 2 * EP * 4                              # wp2, bp1, bp2
        + GP * EP * 4)                                          # output
    cost = pl.CostEstimate(flops=int(flops),
                           transcendentals=int(num_layers * DP),
                           bytes_accessed=int(bytes_accessed))

    grid_spec = pltpu.PrefetchScalarGridSpec(
        num_scalar_prefetch=0,
        grid=(num_layers,),
        in_specs=[
            pl.BlockSpec((NP, NP), lambda l: (0, 0)),           # agg_mat (resident)
            pl.BlockSpec((NP, DP), lambda l: (0, 0)),           # x (resident)
            pl.BlockSpec((1, DP, DP), lambda l: (l, 0, 0)),     # w1 (streamed per layer)
            pl.BlockSpec((1, 1, DP), lambda l: (l, 0, 0)),      # b1
            pl.BlockSpec((1, DP, DP), lambda l: (l, 0, 0)),     # w2
            pl.BlockSpec((1, 1, DP), lambda l: (l, 0, 0)),      # b2
            pl.BlockSpec((1, 1, DP), lambda l: (l, 0, 0)),      # bn gamma
            pl.BlockSpec((1, 1, DP), lambda l: (l, 0, 0)),      # bn beta
            pl.BlockSpec((GP, NP), lambda l: (0, 0)),           # pool_mat (resident)
            pl.BlockSpec((1, DP, EP), lambda l: (l, 0, 0)),     # proj W1 row block
            pl.BlockSpec((1, EP), lambda l: (0, 0)),            # proj b1 (resident)
            pl.BlockSpec((EP, EP), lambda l: (0, 0)),           # proj W2 (resident)
            pl.BlockSpec((1, EP), lambda l: (0, 0)),            # proj b2 (resident)
        ],
        out_specs=pl.BlockSpec((GP, EP), lambda l: (0, 0)),
        scratch_shapes=[
            pltpu.VMEM((NP, DP), jnp.bfloat16),                 # carried node features h
            pltpu.VMEM((GP, EP), jnp.float32),                  # proj Linear-1 accumulator
        ],
    )

    y_pad = pl.pallas_call(
        kernel,
        out_shape=jax.ShapeDtypeStruct((GP, EP), jnp.float32),
        grid_spec=grid_spec,
        compiler_params=pltpu.CompilerParams(
            dimension_semantics=("arbitrary",),                 # layers are sequential
            vmem_limit_bytes=48 * 1024 * 1024,                  # headroom on v7x (64 MiB)
        ),
        cost_estimate=cost,
    )(agg_mat, x_p, w1_s, b1_s, w2_s, b2_s, g_s, be_s,
      pool_mat, wp1_s, bp1_p, wp2_p, bp2_p)

    return y_pad[:num_graphs, :emb]


# ----------------------------------------------------------------------------
if __name__ == "__main__":
    # Small, deterministic graph batch: 2 graphs x 6 nodes (ring topology).
    num_features = 4
    hidden_dim = 32
    num_gc_layers = 3
    num_graphs = 2
    n_nodes = 12

    src, dst = [], []
    for base in (0, 6):
        for i in range(6):
            a, b = base + i, base + (i + 1) % 6
            src += [a, b]
            dst += [b, a]
    edge_index = jnp.array([src, dst], dtype=jnp.int32)
    batch = jnp.array([0] * 6 + [1] * 6, dtype=jnp.int32)

    key = jax.random.PRNGKey(0)
    key, kx, kp = jax.random.split(key, 3)
    x = jax.random.normal(kx, (n_nodes, num_features), jnp.float32)
    params = init_simclr_params(kp, num_features, hidden_dim, num_gc_layers)

    y = simclr_forward(params, x, edge_index, batch, num_graphs)
    y = jax.block_until_ready(y)
    assert y.shape == (num_graphs, hidden_dim * num_gc_layers)
    assert jnp.all(jnp.isfinite(y))
    print("KERNEL_OK")
</pallas_src>

<mosaic_0001>
module attributes {stable_mosaic.version = 11 : i64} {
  func.func @_simclr_layer_kernel(%arg0: i32, %arg1: memref<128x128xbf16, #tpu.memory_space<vmem>>, %arg2: memref<128x128xbf16, #tpu.memory_space<vmem>>, %arg3: memref<1x128x128xbf16, #tpu.memory_space<vmem>>, %arg4: memref<1x1x128xf32, #tpu.memory_space<vmem>>, %arg5: memref<1x128x128xbf16, #tpu.memory_space<vmem>>, %arg6: memref<1x1x128xf32, #tpu.memory_space<vmem>>, %arg7: memref<1x1x128xf32, #tpu.memory_space<vmem>>, %arg8: memref<1x1x128xf32, #tpu.memory_space<vmem>>, %arg9: memref<8x128xbf16, #tpu.memory_space<vmem>>, %arg10: memref<1x128x128xbf16, #tpu.memory_space<vmem>>, %arg11: memref<1x128xf32, #tpu.memory_space<vmem>>, %arg12: memref<128x128xbf16, #tpu.memory_space<vmem>>, %arg13: memref<1x128xf32, #tpu.memory_space<vmem>>, %arg14: memref<8x128xf32, #tpu.memory_space<vmem>>, %arg15: memref<128x128xbf16, #tpu.memory_space<vmem>>, %arg16: memref<8x128xf32, #tpu.memory_space<vmem>>) attributes {dimension_semantics = [#tpu.dimension_semantics<arbitrary>], iteration_bounds = array<i64: 3>, scalar_prefetch = 0 : i64, scratch_operands = 2 : i64, tpu.core_type = #tpu.core_type<tc>, window_params = [{pipeline_mode = #tpu.pipeline_mode<synchronous>, transform_indices = @transform_0, window_bounds = array<i64: 128, 128>}, {pipeline_mode = #tpu.pipeline_mode<synchronous>, transform_indices = @transform_1, window_bounds = array<i64: 128, 128>}, {transform_indices = @transform_2, window_bounds = array<i64: 1, 128, 128>}, {transform_indices = @transform_3, window_bounds = array<i64: 1, 1, 128>}, {transform_indices = @transform_4, window_bounds = array<i64: 1, 128, 128>}, {transform_indices = @transform_5, window_bounds = array<i64: 1, 1, 128>}, {transform_indices = @transform_6, window_bounds = array<i64: 1, 1, 128>}, {transform_indices = @transform_7, window_bounds = array<i64: 1, 1, 128>}, {pipeline_mode = #tpu.pipeline_mode<synchronous>, transform_indices = @transform_8, window_bounds = array<i64: 8, 128>}, {transform_indices = @transform_9, window_bounds = array<i64: 1, 128, 128>}, {pipeline_mode = #tpu.pipeline_mode<synchronous>, transform_indices = @transform_10, window_bounds = array<i64: 1, 128>}, {pipeline_mode = #tpu.pipeline_mode<synchronous>, transform_indices = @transform_11, window_bounds = array<i64: 128, 128>}, {pipeline_mode = #tpu.pipeline_mode<synchronous>, transform_indices = @transform_12, window_bounds = array<i64: 1, 128>}, {pipeline_mode = #tpu.pipeline_mode<synchronous>, transform_indices = @transform_13, window_bounds = array<i64: 8, 128>}]} {
    %c0_i32 = arith.constant 0 : i32
    %0 = arith.cmpi eq, %arg0, %c0_i32 : i32
    %1 = arith.extui %0 : i1 to i32
    %c0_i32_0 = arith.constant 0 : i32
    %2 = arith.cmpi ne, %1, %c0_i32_0 : i32
    scf.if %2 {
      %c0_46 = arith.constant 0 : index
      %c0_47 = arith.constant 0 : index
      %77 = vector.load %arg2[%c0_46, %c0_47] : memref<128x128xbf16, #tpu.memory_space<vmem>>, vector<128x128xbf16>
      %c0_48 = arith.constant 0 : index
      %c0_49 = arith.constant 0 : index
      %78 = vector.load %arg15[%c0_48, %c0_49] : memref<128x128xbf16, #tpu.memory_space<vmem>>, vector<128x128xbf16>
      tpu.vector_store %arg15[%c0_48, %c0_49], %77 {strides = array<i32>} : memref<128x128xbf16, #tpu.memory_space<vmem>>, vector<128x128xbf16>,
      %cst_50 = arith.constant 0.000000e+00 : f32
      %79 = vector.broadcast %cst_50 : f32 to vector<8x128xf32>
      %c0_51 = arith.constant 0 : index
      %c0_52 = arith.constant 0 : index
      %80 = vector.load %arg16[%c0_51, %c0_52] : memref<8x128xf32, #tpu.memory_space<vmem>>, vector<8x128xf32>
      tpu.vector_store %arg16[%c0_51, %c0_52], %79 {strides = array<i32>} : memref<8x128xf32, #tpu.memory_space<vmem>>, vector<8x128xf32>,
    } else {
    }
    %3 = tpu.iota {dimensions = array<i32: 0>} : vector<128x1xi32>
    %c12_i32 = arith.constant 12 : i32
    %4 = vector.broadcast %c12_i32 : i32 to vector<128x1xi32>
    %5 = arith.cmpi slt, %3, %4 : vector<128x1xi32>
    %6 = arith.extui %5 : vector<128x1xi1> to vector<128x1xi32>
    %7 = arith.sitofp %6 : vector<128x1xi32> to vector<128x1xf32>
    %c0 = arith.constant 0 : index
    %c0_1 = arith.constant 0 : index
    %8 = vector.load %arg15[%c0, %c0_1] : memref<128x128xbf16, #tpu.memory_space<vmem>>, vector<128x128xbf16>
    %c0_2 = arith.constant 0 : index
    %c0_3 = arith.constant 0 : index
    %9 = vector.load %arg1[%c0_2, %c0_3] : memref<128x128xbf16, #tpu.memory_space<vmem>>, vector<128x128xbf16>
    %cst = arith.constant dense<0.000000e+00> : vector<128x128xf32>
    %10 = tpu.matmul %9, %8, %cst {dimension_numbers = #tpu.dot_dimension_numbers<[1], [0], [0], [1], [0, 0, 1, 1], [], []>} : vector<128x128xbf16>, vector<128x128xbf16>, vector<128x128xf32> -> vector<128x128xf32>
    %11 = arith.truncf %10 : vector<128x128xf32> to vector<128x128xbf16>
    %c0_4 = arith.constant 0 : index
    %c0_5 = arith.constant 0 : index
    %c0_6 = arith.constant 0 : index
    %12 = vector.load %arg3[%c0_4, %c0_5, %c0_6] : memref<1x128x128xbf16, #tpu.memory_space<vmem>>, vector<1x128x128xbf16>
    %13 = vector.shape_cast %12 : vector<1x128x128xbf16> to vector<128x128xbf16>
    %cst_7 = arith.constant dense<0.000000e+00> : vector<128x128xf32>
    %14 = tpu.matmul %11, %13, %cst_7 {dimension_numbers = #tpu.dot_dimension_numbers<[1], [0], [0], [1], [0, 0, 1, 1], [], []>} : vector<128x128xbf16>, vector<128x128xbf16>, vector<128x128xf32> -> vector<128x128xf32>
    %c0_8 = arith.constant 0 : index
    %c0_9 = arith.constant 0 : index
    %c0_10 = arith.constant 0 : index
    %15 = vector.load %arg4[%c0_8, %c0_9, %c0_10] : memref<1x1x128xf32, #tpu.memory_space<vmem>>, vector<1x1x128xf32>
    %16 = vector.shape_cast %15 : vector<1x1x128xf32> to vector<1x128xf32>
    %17 = vector.broadcast %16 : vector<1x128xf32> to vector<128x128xf32>
    %18 = arith.addf %14, %17 : vector<128x128xf32>
    %cst_11 = arith.constant 0.000000e+00 : f32
    %19 = vector.broadcast %cst_11 : f32 to vector<128x128xf32>
    %20 = arith.maximumf %18, %19 : vector<128x128xf32>
    %21 = arith.truncf %20 : vector<128x128xf32> to vector<128x128xbf16>
    %c0_12 = arith.constant 0 : index
    %c0_13 = arith.constant 0 : index
    %c0_14 = arith.constant 0 : index
    %22 = vector.load %arg5[%c0_12, %c0_13, %c0_14] : memref<1x128x128xbf16, #tpu.memory_space<vmem>>, vector<1x128x128xbf16>
    %23 = vector.shape_cast %22 : vector<1x128x128xbf16> to vector<128x128xbf16>
    %cst_15 = arith.constant dense<0.000000e+00> : vector<128x128xf32>
    %24 = tpu.matmul %21, %23, %cst_15 {dimension_numbers = #tpu.dot_dimension_numbers<[1], [0], [0], [1], [0, 0, 1, 1], [], []>} : vector<128x128xbf16>, vector<128x128xbf16>, vector<128x128xf32> -> vector<128x128xf32>
    %c0_16 = arith.constant 0 : index
    %c0_17 = arith.constant 0 : index
    %c0_18 = arith.constant 0 : index
    %25 = vector.load %arg6[%c0_16, %c0_17, %c0_18] : memref<1x1x128xf32, #tpu.memory_space<vmem>>, vector<1x1x128xf32>
    %26 = vector.shape_cast %25 : vector<1x1x128xf32> to vector<1x128xf32>
    %27 = vector.broadcast %26 : vector<1x128xf32> to vector<128x128xf32>
    %28 = arith.addf %24, %27 : vector<128x128xf32>
    %cst_19 = arith.constant 0.000000e+00 : f32
    %29 = vector.broadcast %cst_19 : f32 to vector<128x128xf32>
    %30 = arith.maximumf %28, %29 : vector<128x128xf32>
    %31 = vector.broadcast %7 : vector<128x1xf32> to vector<128x128xf32>
    %32 = arith.mulf %30, %31 : vector<128x128xf32>
    %cst_20 = arith.constant dense<0.000000e+00> : vector<128xf32>
    %33 = vector.multi_reduction <add>, %32, %cst_20 [0] : vector<128x128xf32> to vector<128xf32>
    %34 = vector.shape_cast %33 : vector<128xf32> to vector<1x128xf32>
    %cst_21 = arith.constant 0.0833333358 : f32
    %35 = vector.broadcast %cst_21 : f32 to vector<1x128xf32>
    %36 = arith.mulf %34, %35 : vector<1x128xf32>
    %37 = arith.mulf %32, %32 : vector<128x128xf32>
    %cst_22 = arith.constant dense<0.000000e+00> : vector<128xf32>
    %38 = vector.multi_reduction <add>, %37, %cst_22 [0] : vector<128x128xf32> to vector<128xf32>
    %39 = vector.shape_cast %38 : vector<128xf32> to vector<1x128xf32>
    %cst_23 = arith.constant 0.0833333358 : f32
    %40 = vector.broadcast %cst_23 : f32 to vector<1x128xf32>
    %41 = arith.mulf %39, %40 : vector<1x128xf32>
    %42 = arith.mulf %36, %36 : vector<1x128xf32>
    %43 = arith.subf %41, %42 : vector<1x128xf32>
    %cst_24 = arith.constant 0.000000e+00 : f32
    %44 = vector.broadcast %cst_24 : f32 to vector<1x128xf32>
    %45 = arith.maximumf %43, %44 : vector<1x128xf32>
    %cst_25 = arith.constant 9.99999974E-6 : f32
    %46 = vector.broadcast %cst_25 : f32 to vector<1x128xf32>
    %47 = arith.addf %45, %46 : vector<1x128xf32>
    %48 = math.rsqrt %47 : vector<1x128xf32>
    %49 = vector.broadcast %36 : vector<1x128xf32> to vector<128x128xf32>
    %50 = arith.subf %30, %49 : vector<128x128xf32>
    %51 = vector.broadcast %48 : vector<1x128xf32> to vector<128x128xf32>
    %52 = arith.mulf %50, %51 : vector<128x128xf32>
    %c0_26 = arith.constant 0 : index
    %c0_27 = arith.constant 0 : index
    %c0_28 = arith.constant 0 : index
    %53 = vector.load %arg7[%c0_26, %c0_27, %c0_28] : memref<1x1x128xf32, #tpu.memory_space<vmem>>, vector<1x1x128xf32>
    %54 = vector.shape_cast %53 : vector<1x1x128xf32> to vector<1x128xf32>
    %55 = vector.broadcast %54 : vector<1x128xf32> to vector<128x128xf32>
    %56 = arith.mulf %52, %55 : vector<128x128xf32>
    %c0_29 = arith.constant 0 : index
    %c0_30 = arith.constant 0 : index
    %c0_31 = arith.constant 0 : index
    %57 = vector.load %arg8[%c0_29, %c0_30, %c0_31] : memref<1x1x128xf32, #tpu.memory_space<vmem>>, vector<1x1x128xf32>
    %58 = vector.shape_cast %57 : vector<1x1x128xf32> to vector<1x128xf32>
    %59 = vector.broadcast %58 : vector<1x128xf32> to vector<128x128xf32>
    %60 = arith.addf %56, %59 : vector<128x128xf32>
    %61 = vector.broadcast %7 : vector<128x1xf32> to vector<128x128xf32>
    %62 = arith.mulf %60, %61 : vector<128x128xf32>
    %63 = arith.truncf %62 : vector<128x128xf32> to vector<128x128xbf16>
    %c0_32 = arith.constant 0 : index
    %c0_33 = arith.constant 0 : index
    %64 = vector.load %arg9[%c0_32, %c0_33] : memref<8x128xbf16, #tpu.memory_space<vmem>>, vector<8x128xbf16>
    %cst_34 = arith.constant dense<0.000000e+00> : vector<8x128xf32>
    %65 = tpu.matmul %64, %63, %cst_34 {dimension_numbers = #tpu.dot_dimension_numbers<[1], [0], [0], [1], [0, 0, 1, 1], [], []>} : vector<8x128xbf16>, vector<128x128xbf16>, vector<8x128xf32> -> vector<8x128xf32>
    %c0_35 = arith.constant 0 : index
    %c0_36 = arith.constant 0 : index
    %66 = vector.load %arg16[%c0_35, %c0_36] : memref<8x128xf32, #tpu.memory_space<vmem>>, vector<8x128xf32>
    %67 = arith.truncf %65 : vector<8x128xf32> to vector<8x128xbf16>
    %c0_37 = arith.constant 0 : index
    %c0_38 = arith.constant 0 : index
    %c0_39 = arith.constant 0 : index
    %68 = vector.load %arg10[%c0_37, %c0_38, %c0_39] : memref<1x128x128xbf16, #tpu.memory_space<vmem>>, vector<1x128x128xbf16>
    %69 = vector.shape_cast %68 : vector<1x128x128xbf16> to vector<128x128xbf16>
    %cst_40 = arith.constant dense<0.000000e+00> : vector<8x128xf32>
    %70 = tpu.matmul %67, %69, %cst_40 {dimension_numbers = #tpu.dot_dimension_numbers<[1], [0], [0], [1], [0, 0, 1, 1], [], []>} : vector<8x128xbf16>, vector<128x128xbf16>, vector<8x128xf32> -> vector<8x128xf32>
    %71 = arith.addf %66, %70 : vector<8x128xf32>
    %c0_41 = arith.constant 0 : index
    %c0_42 = arith.constant 0 : index
    %72 = vector.load %arg16[%c0_41, %c0_42] : memref<8x128xf32, #tpu.memory_space<vmem>>, vector<8x128xf32>
    tpu.vector_store %arg16[%c0_41, %c0_42], %71 {strides = array<i32>} : memref<8x128xf32, #tpu.memory_space<vmem>>, vector<8x128xf32>,
    %c0_43 = arith.constant 0 : index
    %c0_44 = arith.constant 0 : index
    %73 = vector.load %arg15[%c0_43, %c0_44] : memref<128x128xbf16, #tpu.memory_space<vmem>>, vector<128x128xbf16>
    tpu.vector_store %arg15[%c0_43, %c0_44], %63 {strides = array<i32>} : memref<128x128xbf16, #tpu.memory_space<vmem>>, vector<128x128xbf16>,
    %c2_i32 = arith.constant 2 : i32
    %74 = arith.cmpi eq, %arg0, %c2_i32 : i32
    %75 = arith.extui %74 : i1 to i32
    %c0_i32_45 = arith.constant 0 : i32
    %76 = arith.cmpi ne, %75, %c0_i32_45 : i32
    scf.if %76 {
      %c0_46 = arith.constant 0 : index
      %c0_47 = arith.constant 0 : index
      %77 = vector.load %arg16[%c0_46, %c0_47] : memref<8x128xf32, #tpu.memory_space<vmem>>, vector<8x128xf32>
      %c0_48 = arith.constant 0 : index
      %c0_49 = arith.constant 0 : index
      %78 = vector.load %arg11[%c0_48, %c0_49] : memref<1x128xf32, #tpu.memory_space<vmem>>, vector<1x128xf32>
      %79 = vector.broadcast %78 : vector<1x128xf32> to vector<8x128xf32>
      %80 = arith.addf %77, %79 : vector<8x128xf32>
      %cst_50 = arith.constant 0.000000e+00 : f32
      %81 = vector.broadcast %cst_50 : f32 to vector<8x128xf32>
      %82 = arith.maximumf %80, %81 : vector<8x128xf32>
      %83 = arith.truncf %82 : vector<8x128xf32> to vector<8x128xbf16>
      %c0_51 = arith.constant 0 : index
      %c0_52 = arith.constant 0 : index
      %84 = vector.load %arg12[%c0_51, %c0_52] : memref<128x128xbf16, #tpu.memory_space<vmem>>, vector<128x128xbf16>
      %cst_53 = arith.constant dense<0.000000e+00> : vector<8x128xf32>
      %85 = tpu.matmul %83, %84, %cst_53 {dimension_numbers = #tpu.dot_dimension_numbers<[1], [0], [0], [1], [0, 0, 1, 1], [], []>} : vector<8x128xbf16>, vector<128x128xbf16>, vector<8x128xf32> -> vector<8x128xf32>
      %c0_54 = arith.constant 0 : index
      %c0_55 = arith.constant 0 : index
      %86 = vector.load %arg13[%c0_54, %c0_55] : memref<1x128xf32, #tpu.memory_space<vmem>>, vector<1x128xf32>
      %87 = vector.broadcast %86 : vector<1x128xf32> to vector<8x128xf32>
      %88 = arith.addf %85, %87 : vector<8x128xf32>
      %c0_56 = arith.constant 0 : index
      %c0_57 = arith.constant 0 : index
      %89 = vector.load %arg14[%c0_56, %c0_57] : memref<8x128xf32, #tpu.memory_space<vmem>>, vector<8x128xf32>
      tpu.vector_store %arg14[%c0_56, %c0_57], %88 {strides = array<i32>} : memref<8x128xf32, #tpu.memory_space<vmem>>, vector<8x128xf32>,
    } else {
    }
    return
  }
  func.func @transform_0(%arg0: i32) -> (i32, i32) {
    %c0_i32 = arith.constant 0 : i32
    %c0_i32_0 = arith.constant 0 : i32
    %c0_i32_1 = arith.constant 0 : i32
    return %c0_i32, %c0_i32_0 : i32, i32
  }
  func.func @transform_1(%arg0: i32) -> (i32, i32) {
    %c0_i32 = arith.constant 0 : i32
    %c0_i32_0 = arith.constant 0 : i32
    %c0_i32_1 = arith.constant 0 : i32
    return %c0_i32, %c0_i32_0 : i32, i32
  }
  func.func @transform_2(%arg0: i32) -> (i32, i32, i32) {
    %c0_i32 = arith.constant 0 : i32
    %c0_i32_0 = arith.constant 0 : i32
    %c0_i32_1 = arith.constant 0 : i32
    return %arg0, %c0_i32, %c0_i32_0 : i32, i32, i32
  }
  func.func @transform_3(%arg0: i32) -> (i32, i32, i32) {
    %c0_i32 = arith.constant 0 : i32
    %c0_i32_0 = arith.constant 0 : i32
    %c0_i32_1 = arith.constant 0 : i32
    return %arg0, %c0_i32, %c0_i32_0 : i32, i32, i32
  }
  func.func @transform_4(%arg0: i32) -> (i32, i32, i32) {
    %c0_i32 = arith.constant 0 : i32
    %c0_i32_0 = arith.constant 0 : i32
    %c0_i32_1 = arith.constant 0 : i32
    return %arg0, %c0_i32, %c0_i32_0 : i32, i32, i32
  }
  func.func @transform_5(%arg0: i32) -> (i32, i32, i32) {
    %c0_i32 = arith.constant 0 : i32
    %c0_i32_0 = arith.constant 0 : i32
    %c0_i32_1 = arith.constant 0 : i32
    return %arg0, %c0_i32, %c0_i32_0 : i32, i32, i32
  }
  func.func @transform_6(%arg0: i32) -> (i32, i32, i32) {
    %c0_i32 = arith.constant 0 : i32
    %c0_i32_0 = arith.constant 0 : i32
    %c0_i32_1 = arith.constant 0 : i32
    return %arg0, %c0_i32, %c0_i32_0 : i32, i32, i32
  }
  func.func @transform_7(%arg0: i32) -> (i32, i32, i32) {
    %c0_i32 = arith.constant 0 : i32
    %c0_i32_0 = arith.constant 0 : i32
    %c0_i32_1 = arith.constant 0 : i32
    return %arg0, %c0_i32, %c0_i32_0 : i32, i32, i32
  }
  func.func @transform_8(%arg0: i32) -> (i32, i32) {
    %c0_i32 = arith.constant 0 : i32
    %c0_i32_0 = arith.constant 0 : i32
    %c0_i32_1 = arith.constant 0 : i32
    return %c0_i32, %c0_i32_0 : i32, i32
  }
  func.func @transform_9(%arg0: i32) -> (i32, i32, i32) {
    %c0_i32 = arith.constant 0 : i32
    %c0_i32_0 = arith.constant 0 : i32
    %c0_i32_1 = arith.constant 0 : i32
    return %arg0, %c0_i32, %c0_i32_0 : i32, i32, i32
  }
  func.func @transform_10(%arg0: i32) -> (i32, i32) {
    %c0_i32 = arith.constant 0 : i32
    %c0_i32_0 = arith.constant 0 : i32
    %c0_i32_1 = arith.constant 0 : i32
    return %c0_i32, %c0_i32_0 : i32, i32
  }
  func.func @transform_11(%arg0: i32) -> (i32, i32) {
    %c0_i32 = arith.constant 0 : i32
    %c0_i32_0 = arith.constant 0 : i32
    %c0_i32_1 = arith.constant 0 : i32
    return %c0_i32, %c0_i32_0 : i32, i32
  }
  func.func @transform_12(%arg0: i32) -> (i32, i32) {
    %c0_i32 = arith.constant 0 : i32
    %c0_i32_0 = arith.constant 0 : i32
    %c0_i32_1 = arith.constant 0 : i32
    return %c0_i32, %c0_i32_0 : i32, i32
  }
  func.func @transform_13(%arg0: i32) -> (i32, i32) {
    %c0_i32 = arith.constant 0 : i32
    %c0_i32_0 = arith.constant 0 : i32
    %c0_i32_1 = arith.constant 0 : i32
    return %c0_i32, %c0_i32_0 : i32, i32
  }
}

</mosaic_0001>

<llo_original>
// kernel: tpu_custom_call.1
$region0: #{tpu_custom_call.1}
  #allocation0 [shape = 'u32[]', space=smem, size = 0x4, offset = 0x4, fixed_abs, tag = 'smem constant byte address 0x4 - core index']
  #allocation1 [shape = 'u32[144,128]{1,0:T(1,128)}', space=vmem, size = 0x12000, scoped, tag = 'internal scratch']
  #allocation2 [shape = 'bf16[128,128]{1,0:T(16,128)(2,1)}', space=vmem, size = 0x8000, scoped, tag = 'scratch operand']
  #allocation3 [shape = 'f32[8,128]{1,0:T(8,128)}', space=vmem, size = 0x1000, scoped, tag = 'scratch operand']
  %s0 = inlined_call_operand.hbm [shape: bf16[128,128], index: 0, kind: input, shape index: {}]
  %s1 = inlined_call_operand.hbm [shape: bf16[128,128], index: 1, kind: input, shape index: {}]
  %s2 = inlined_call_operand.hbm [shape: bf16[3,128,128], index: 2, kind: input, shape index: {}]
  %s3 = inlined_call_operand.vmem [shape: f32[3,1,128], index: 3, kind: input, shape index: {}]
  %s4 = inlined_call_operand.hbm [shape: bf16[3,128,128], index: 4, kind: input, shape index: {}]
  %s5 = inlined_call_operand.vmem [shape: f32[3,1,128], index: 5, kind: input, shape index: {}]
  %s6 = inlined_call_operand.vmem [shape: f32[3,1,128], index: 6, kind: input, shape index: {}]
  %s7 = inlined_call_operand.vmem [shape: f32[3,1,128], index: 7, kind: input, shape index: {}]
  %s8 = inlined_call_operand.vmem [shape: bf16[8,128], index: 8, kind: input, shape index: {}]
  %s9 = inlined_call_operand.hbm [shape: bf16[3,128,128], index: 9, kind: input, shape index: {}]
  %s10 = inlined_call_operand.vmem [shape: f32[1,128], index: 10, kind: input, shape index: {}]
  %s11 = inlined_call_operand.hbm [shape: bf16[128,128], index: 11, kind: input, shape index: {}]
  %s12 = inlined_call_operand.vmem [shape: f32[1,128], index: 12, kind: input, shape index: {}]
  %s13 = inlined_call_operand.hbm [shape: f32[8,128], index: 13, kind: output, shape index: {}]
  %s14 = sld [smem:[#allocation0]]
  $region117: #{tpu_custom_call.1} parent=0
    _
  %s16 = ssub.s32 1, %s14
  %s17 = scalar_select 0, %s16, %s14
  $region1: #{tpu_custom_call.1} parent=0
    #allocation4 [shape = 'u8[32768]{0}', space=vmem, size = 0x8000, scoped, tag = 'input window, operand 0, single buffered']
    #allocation5 [shape = 's32[2]{0}', space=sflag, size = 0x8, scoped, tag = 'scoped memory for tpu_custom_call.1']
    #allocation6 [shape = 's32[2]{0}', space=sflag, size = 0x8, scoped, tag = 'scoped memory for tpu_custom_call.1']
    #allocation7 [shape = 'u8[32768]{0}', space=vmem, size = 0x8000, scoped, tag = 'input window, operand 1, single buffered']
    #allocation8 [shape = 's32[1]{0}', space=sflag, size = 0x4, scoped, tag = 'scoped memory for tpu_custom_call.1']
    #allocation9 [shape = 'u8[65536]{0}', space=vmem, size = 0x10000, scoped, tag = 'input window, operand 2']
    #allocation10 [shape = 'u8[65536]{0}', space=vmem, size = 0x10000, scoped, tag = 'input window, operand 4']
    #allocation11 [shape = 'u8[65536]{0}', space=vmem, size = 0x10000, scoped, tag = 'input window, operand 9']
    #allocation12 [shape = 'u8[32768]{0}', space=vmem, size = 0x8000, scoped, tag = 'input window, operand 11, single buffered']
    #allocation13 [shape = 'u8[4096]{0}', space=vmem, size = 0x1000, scoped, tag = 'output window, operand 0, single buffered']
    %18 = vsyncpa [#allocation5], 0
    %19 = vsyncpa [#allocation8], 0
    %20 = vsyncpa [#allocation6], 0
    loop: start=0, step=1, limit=5
    $region2: #{tpu_custom_call.1} parent=1 // loop_pre_header
      _
    $region3: #{tpu_custom_call.1} parent=1 // loop_header
      %s22 = sphi 0, %s26
      %p23 = scmp.ge.s32.totalorder %s22, 5
      %s30 = sphi 0, %s30
      %s32 = sphi 0, %s30
      %s33 = sphi 0, %s32
      %s47 = sphi 0, %s33
      %s51 = sphi 0, %s51
      %s53 = sphi 0, %s51
      %s54 = sphi 0, %s53
      %s68 = sphi 0, %s54
      %s74 = sphi 0, %s76
      %s77 = sphi 0, %s74
      %s78 = sphi 0, %s77
      %s94 = sphi 0, %s78
      %s100 = sphi 0, %s102
      %s103 = sphi 0, %s100
      %s104 = sphi 0, %s103
      %s120 = sphi 0, %s104
      %s126 = sphi 0, %s128
      %s129 = sphi 0, %s126
      %s130 = sphi 0, %s129
      %s146 = sphi 0, %s130
      %s152 = sphi 0, %s154
      %s155 = sphi 0, %s152
      %s156 = sphi 0, %s155
      %s172 = sphi 0, %s156
      %s178 = sphi 0, %s180
      %s181 = sphi 0, %s178
      %s182 = sphi 0, %s181
      %s198 = sphi 0, %s182
      %s204 = sphi 0, %s206
      %s207 = sphi 0, %s204
      %s208 = sphi 0, %s207
      %s224 = sphi 0, %s208
      %s228 = sphi 0, %s228
      %s230 = sphi 0, %s228
      %s231 = sphi 0, %s230
      %s245 = sphi 0, %s231
      %s251 = sphi 0, %s253
      %s254 = sphi 0, %s251
      %s255 = sphi 0, %s254
      %s271 = sphi 0, %s255
      %s275 = sphi 0, %s275
      %s277 = sphi 0, %s275
      %s278 = sphi 0, %s277
      %s292 = sphi 0, %s278
      %s296 = sphi 0, %s296
      %s298 = sphi 0, %s296
      %s299 = sphi 0, %s298
      %s313 = sphi 0, %s299
      %s317 = sphi 0, %s317
      %s319 = sphi 0, %s317
      %s320 = sphi 0, %s319
      %s334 = sphi 0, %s320
      %s338 = sphi 0, %s338
      %s340 = sphi 0, %s338
      %s341 = sphi 0, %s340
      %s355 = sphi 0, %s341
    $region4: #{tpu_custom_call.1} parent=1 // loop_header_branch
      %25 = sbr.rel (%p23) target = $region8
    $region5: #{tpu_custom_call.1} parent=1 // loop_body
      %s27 = ssub.s32 %s22, 1
      %s28 = ssub.s32 %s22, 2
      %s29 = sadd.s32 %s22, 1
      %s31 = sadd.s32 %s30, 1
      %p34 = scmp.eq.s32.totalorder %s22, 2
      %p35 = scmp.ne.s32.totalorder %s30, %s32
      %p36 = scmp.eq.s32.totalorder %s22, 0
      %p37 = por %p35, %p36
      %p38 = scmp.ne.s32.totalorder %s30, %s32
      %p39 = scmp.eq.s32.totalorder %s27, 2
      %p40 = por %p38, %p39
      %p41 = scmp.ne.s32.totalorder %s32, %s33
      %p42 = scmp.eq.s32.totalorder %s27, 0
      %p43 = por %p41, %p42
      %p44 = scmp.ne.s32.totalorder %s32, %s33
      %p45 = scmp.eq.s32.totalorder %s28, 2
      %p46 = por %p44, %p45
      %p48 = scmp.ne.s32.totalorder %s33, %s47
      %p49 = scmp.eq.s32.totalorder %s28, 0
      %p50 = por %p48, %p49
      %s52 = sadd.s32 %s51, 1
      %p55 = scmp.eq.s32.totalorder %s22, 2
      %p56 = scmp.ne.s32.totalorder %s51, %s53
      %p57 = scmp.eq.s32.totalorder %s22, 0
      %p58 = por %p56, %p57
      %p59 = scmp.ne.s32.totalorder %s51, %s53
      %p60 = scmp.eq.s32.totalorder %s27, 2
      %p61 = por %p59, %p60
      %p62 = scmp.ne.s32.totalorder %s53, %s54
      %p63 = scmp.eq.s32.totalorder %s27, 0
      %p64 = por %p62, %p63
      %p65 = scmp.ne.s32.totalorder %s53, %s54
      %p66 = scmp.eq.s32.totalorder %s28, 2
      %p67 = por %p65, %p66
      %p69 = scmp.ne.s32.totalorder %s54, %s68
      %p70 = scmp.eq.s32.totalorder %s28, 0
      %p71 = por %p69, %p70
      %s72 = ssub.s32 %s22, %s29
      %p73 = scmp.eq.s32.totalorder %s72, 0
      %s75 = sadd.s32 %s74, 1
      %s76 = scalar_select %p73, %s74, %s75
      %p79 = pneg %p73
      %p80 = scmp.eq.s32.totalorder %s22, 2
      %p81 = por %p79, %p80
      %p82 = scmp.ne.s32.totalorder %s74, %s77
      %p83 = scmp.eq.s32.totalorder %s22, 0
      %p84 = por %p82, %p83
      %p85 = scmp.ne.s32.totalorder %s74, %s77
      %p86 = scmp.eq.s32.totalorder %s27, 2
      %p87 = por %p85, %p86
      %p88 = scmp.ne.s32.totalorder %s77, %s78
      %p89 = scmp.eq.s32.totalorder %s27, 0
      %p90 = por %p88, %p89
      %p91 = scmp.ne.s32.totalorder %s77, %s78
      %p92 = scmp.eq.s32.totalorder %s28, 2
      %p93 = por %p91, %p92
      %p95 = scmp.ne.s32.totalorder %s78, %s94
      %p96 = scmp.eq.s32.totalorder %s28, 0
      %p97 = por %p95, %p96
      %s98 = ssub.s32 %s22, %s29
      %p99 = scmp.eq.s32.totalorder %s98, 0
      %s101 = sadd.s32 %s100, 1
      %s102 = scalar_select %p99, %s100, %s101
      %p105 = pneg %p99
      %p106 = scmp.eq.s32.totalorder %s22, 2
      %p107 = por %p105, %p106
      %p108 = scmp.ne.s32.totalorder %s100, %s103
      %p109 = scmp.eq.s32.totalorder %s22, 0
      %p110 = por %p108, %p109
      %p111 = scmp.ne.s32.totalorder %s100, %s103
      %p112 = scmp.eq.s32.totalorder %s27, 2
      %p113 = por %p111, %p112
      %p114 = scmp.ne.s32.totalorder %s103, %s104
      %p115 = scmp.eq.s32.totalorder %s27, 0
      %p116 = por %p114, %p115
      %p117 = scmp.ne.s32.totalorder %s103, %s104
      %p118 = scmp.eq.s32.totalorder %s28, 2
      %p119 = por %p117, %p118
      %p121 = scmp.ne.s32.totalorder %s104, %s120
      %p122 = scmp.eq.s32.totalorder %s28, 0
      %p123 = por %p121, %p122
      %s124 = ssub.s32 %s22, %s29
      %p125 = scmp.eq.s32.totalorder %s124, 0
      %s127 = sadd.s32 %s126, 1
      %s128 = scalar_select %p125, %s126, %s127
      %p131 = pneg %p125
      %p132 = scmp.eq.s32.totalorder %s22, 2
      %p133 = por %p131, %p132
      %p134 = scmp.ne.s32.totalorder %s126, %s129
      %p135 = scmp.eq.s32.totalorder %s22, 0
      %p136 = por %p134, %p135
      %p137 = scmp.ne.s32.totalorder %s126, %s129
      %p138 = scmp.eq.s32.totalorder %s27, 2
      %p139 = por %p137, %p138
      %p140 = scmp.ne.s32.totalorder %s129, %s130
      %p141 = scmp.eq.s32.totalorder %s27, 0
      %p142 = por %p140, %p141
      %p143 = scmp.ne.s32.totalorder %s129, %s130
      %p144 = scmp.eq.s32.totalorder %s28, 2
      %p145 = por %p143, %p144
      %p147 = scmp.ne.s32.totalorder %s130, %s146
      %p148 = scmp.eq.s32.totalorder %s28, 0
      %p149 = por %p147, %p148
      %s150 = ssub.s32 %s22, %s29
      %p151 = scmp.eq.s32.totalorder %s150, 0
      %s153 = sadd.s32 %s152, 1
      %s154 = scalar_select %p151, %s152, %s153
      %p157 = pneg %p151
      %p158 = scmp.eq.s32.totalorder %s22, 2
      %p159 = por %p157, %p158
      %p160 = scmp.ne.s32.totalorder %s152, %s155
      %p161 = scmp.eq.s32.totalorder %s22, 0
      %p162 = por %p160, %p161
      %p163 = scmp.ne.s32.totalorder %s152, %s155
      %p164 = scmp.eq.s32.totalorder %s27, 2
      %p165 = por %p163, %p164
      %p166 = scmp.ne.s32.totalorder %s155, %s156
      %p167 = scmp.eq.s32.totalorder %s27, 0
      %p168 = por %p166, %p167
      %p169 = scmp.ne.s32.totalorder %s155, %s156
      %p170 = scmp.eq.s32.totalorder %s28, 2
      %p171 = por %p169, %p170
      %p173 = scmp.ne.s32.totalorder %s156, %s172
      %p174 = scmp.eq.s32.totalorder %s28, 0
      %p175 = por %p173, %p174
      %s176 = ssub.s32 %s22, %s29
      %p177 = scmp.eq.s32.totalorder %s176, 0
      %s179 = sadd.s32 %s178, 1
      %s180 = scalar_select %p177, %s178, %s179
      %p183 = pneg %p177
      %p184 = scmp.eq.s32.totalorder %s22, 2
      %p185 = por %p183, %p184
      %p186 = scmp.ne.s32.totalorder %s178, %s181
      %p187 = scmp.eq.s32.totalorder %s22, 0
      %p188 = por %p186, %p187
      %p189 = scmp.ne.s32.totalorder %s178, %s181
      %p190 = scmp.eq.s32.totalorder %s27, 2
      %p191 = por %p189, %p190
      %p192 = scmp.ne.s32.totalorder %s181, %s182
      %p193 = scmp.eq.s32.totalorder %s27, 0
      %p194 = por %p192, %p193
      %p195 = scmp.ne.s32.totalorder %s181, %s182
      %p196 = scmp.eq.s32.totalorder %s28, 2
      %p197 = por %p195, %p196
      %p199 = scmp.ne.s32.totalorder %s182, %s198
      %p200 = scmp.eq.s32.totalorder %s28, 0
      %p201 = por %p199, %p200
      %s202 = ssub.s32 %s22, %s29
      %p203 = scmp.eq.s32.totalorder %s202, 0
      %s205 = sadd.s32 %s204, 1
      %s206 = scalar_select %p203, %s204, %s205
      %p209 = pneg %p203
      %p210 = scmp.eq.s32.totalorder %s22, 2
      %p211 = por %p209, %p210
      %p212 = scmp.ne.s32.totalorder %s204, %s207
      %p213 = scmp.eq.s32.totalorder %s22, 0
      %p214 = por %p212, %p213
      %p215 = scmp.ne.s32.totalorder %s204, %s207
      %p216 = scmp.eq.s32.totalorder %s27, 2
      %p217 = por %p215, %p216
      %p218 = scmp.ne.s32.totalorder %s207, %s208
      %p219 = scmp.eq.s32.totalorder %s27, 0
      %p220 = por %p218, %p219
      %p221 = scmp.ne.s32.totalorder %s207, %s208
      %p222 = scmp.eq.s32.totalorder %s28, 2
      %p223 = por %p221, %p222
      %p225 = scmp.ne.s32.totalorder %s208, %s224
      %p226 = scmp.eq.s32.totalorder %s28, 0
      %p227 = por %p225, %p226
      %s229 = sadd.s32 %s228, 1
      %p232 = scmp.eq.s32.totalorder %s22, 2
      %p233 = scmp.ne.s32.totalorder %s228, %s230
      %p234 = scmp.eq.s32.totalorder %s22, 0
      %p235 = por %p233, %p234
      %p236 = scmp.ne.s32.totalorder %s228, %s230
      %p237 = scmp.eq.s32.totalorder %s27, 2
      %p238 = por %p236, %p237
      %p239 = scmp.ne.s32.totalorder %s230, %s231
      %p240 = scmp.eq.s32.totalorder %s27, 0
      %p241 = por %p239, %p240
      %p242 = scmp.ne.s32.totalorder %s230, %s231
      %p243 = scmp.eq.s32.totalorder %s28, 2
      %p244 = por %p242, %p243
      %p246 = scmp.ne.s32.totalorder %s231, %s245
      %p247 = scmp.eq.s32.totalorder %s28, 0
      %p248 = por %p246, %p247
      %s249 = ssub.s32 %s22, %s29
      %p250 = scmp.eq.s32.totalorder %s249, 0
      %s252 = sadd.s32 %s251, 1
      %s253 = scalar_select %p250, %s251, %s252
      %p256 = pneg %p250
      %p257 = scmp.eq.s32.totalorder %s22, 2
      %p258 = por %p256, %p257
      %p259 = scmp.ne.s32.totalorder %s251, %s254
      %p260 = scmp.eq.s32.totalorder %s22, 0
      %p261 = por %p259, %p260
      %p262 = scmp.ne.s32.totalorder %s251, %s254
      %p263 = scmp.eq.s32.totalorder %s27, 2
      %p264 = por %p262, %p263
      %p265 = scmp.ne.s32.totalorder %s254, %s255
      %p266 = scmp.eq.s32.totalorder %s27, 0
      %p267 = por %p265, %p266
      %p268 = scmp.ne.s32.totalorder %s254, %s255
      %p269 = scmp.eq.s32.totalorder %s28, 2
      %p270 = por %p268, %p269
      %p272 = scmp.ne.s32.totalorder %s255, %s271
      %p273 = scmp.eq.s32.totalorder %s28, 0
      %p274 = por %p272, %p273
      %s276 = sadd.s32 %s275, 1
      %p279 = scmp.eq.s32.totalorder %s22, 2
      %p280 = scmp.ne.s32.totalorder %s275, %s277
      %p281 = scmp.eq.s32.totalorder %s22, 0
      %p282 = por %p280, %p281
      %p283 = scmp.ne.s32.totalorder %s275, %s277
      %p284 = scmp.eq.s32.totalorder %s27, 2
      %p285 = por %p283, %p284
      %p286 = scmp.ne.s32.totalorder %s277, %s278
      %p287 = scmp.eq.s32.totalorder %s27, 0
      %p288 = por %p286, %p287
      %p289 = scmp.ne.s32.totalorder %s277, %s278
      %p290 = scmp.eq.s32.totalorder %s28, 2
      %p291 = por %p289, %p290
      %p293 = scmp.ne.s32.totalorder %s278, %s292
      %p294 = scmp.eq.s32.totalorder %s28, 0
      %p295 = por %p293, %p294
      %s297 = sadd.s32 %s296, 1
      %p300 = scmp.eq.s32.totalorder %s22, 2
      %p301 = scmp.ne.s32.totalorder %s296, %s298
      %p302 = scmp.eq.s32.totalorder %s22, 0
      %p303 = por %p301, %p302
      %p304 = scmp.ne.s32.totalorder %s296, %s298
      %p305 = scmp.eq.s32.totalorder %s27, 2
      %p306 = por %p304, %p305
      %p307 = scmp.ne.s32.totalorder %s298, %s299
      %p308 = scmp.eq.s32.totalorder %s27, 0
      %p309 = por %p307, %p308
      %p310 = scmp.ne.s32.totalorder %s298, %s299
      %p311 = scmp.eq.s32.totalorder %s28, 2
      %p312 = por %p310, %p311
      %p314 = scmp.ne.s32.totalorder %s299, %s313
      %p315 = scmp.eq.s32.totalorder %s28, 0
      %p316 = por %p314, %p315
      %s318 = sadd.s32 %s317, 1
      %p321 = scmp.eq.s32.totalorder %s22, 2
      %p322 = scmp.ne.s32.totalorder %s317, %s319
      %p323 = scmp.eq.s32.totalorder %s22, 0
      %p324 = por %p322, %p323
      %p325 = scmp.ne.s32.totalorder %s317, %s319
      %p326 = scmp.eq.s32.totalorder %s27, 2
      %p327 = por %p325, %p326
      %p328 = scmp.ne.s32.totalorder %s319, %s320
      %p329 = scmp.eq.s32.totalorder %s27, 0
      %p330 = por %p328, %p329
      %p331 = scmp.ne.s32.totalorder %s319, %s320
      %p332 = scmp.eq.s32.totalorder %s28, 2
      %p333 = por %p331, %p332
      %p335 = scmp.ne.s32.totalorder %s320, %s334
      %p336 = scmp.eq.s32.totalorder %s28, 0
      %p337 = por %p335, %p336
      %s339 = sadd.s32 %s338, 1
      %p342 = scmp.eq.s32.totalorder %s22, 2
      %p343 = scmp.ne.s32.totalorder %s338, %s340
      %p344 = scmp.eq.s32.totalorder %s22, 0
      %p345 = por %p343, %p344
      %p346 = scmp.ne.s32.totalorder %s338, %s340
      %p347 = scmp.eq.s32.totalorder %s27, 2
      %p348 = por %p346, %p347
      %p349 = scmp.ne.s32.totalorder %s340, %s341
      %p350 = scmp.eq.s32.totalorder %s27, 0
      %p351 = por %p349, %p350
      %p352 = scmp.ne.s32.totalorder %s340, %s341
      %p353 = scmp.eq.s32.totalorder %s28, 2
      %p354 = por %p352, %p353
      %p356 = scmp.ne.s32.totalorder %s341, %s355
      %p357 = scmp.eq.s32.totalorder %s28, 0
      %p358 = por %p356, %p357
      %p359 = scmp.le.s32.totalorder 1, %s22
      %p360 = scmp.lt.s32.totalorder %s22, 4
      %p361 = pnand %p359, %p360
      %p362 = pneg %p361
      // Predicated region
      $region9: #{tpu_custom_call.1} parent=5 // pred_check
        _
      $region10: #{tpu_custom_call.1} parent=5 // pred_check_branch
        %364 = sbr.rel (%p361) target = $region12
      $region11: #{tpu_custom_call.1} parent=5 // pred_region
        %s365 = ssub.s32 %s22, 1
        // Predicated region
        $region13: #{tpu_custom_call.1} parent=11 // pred_check
          %p366 = pneg %p43
        $region14: #{tpu_custom_call.1} parent=11 // pred_check_branch
          %368 = sbr.rel (%p366) target = $region16
        $region15: #{tpu_custom_call.1} parent=11 // pred_region
          %s370 = ssub.s32 1024, 1024
          %371 = vsyncadd [#allocation5], %s370
          %s372 = sshll.u32 [#allocation4], 4
          %s373 = int_to_ptr.vmem [resolvable:$true] %s372
          %378 = dma.hbm_to_vmem [thread:$0]  %s0, 1024, %s373, [#allocation5], 64, 64, 4
        $region16: #{tpu_custom_call.1} parent=11 // pred_fallthru
          _
        // Predicated region
        $region17: #{tpu_custom_call.1} parent=11 // pred_check
          %p379 = pneg %p64
        $region18: #{tpu_custom_call.1} parent=11 // pred_check_branch
          %381 = sbr.rel (%p379) target = $region20
        $region19: #{tpu_custom_call.1} parent=11 // pred_region
          %s383 = ssub.s32 1024, 1024
          %384 = vsyncadd [#allocation8], %s383
          %s385 = sshll.u32 [#allocation7], 4
          %s386 = int_to_ptr.vmem [resolvable:$true] %s385
          %391 = dma.hbm_to_vmem [thread:$0]  %s1, 1024, %s386, [#allocation8], 64, 64, 4
        $region20: #{tpu_custom_call.1} parent=11 // pred_fallthru
          _
        // Predicated region
        $region21: #{tpu_custom_call.1} parent=11 // pred_check
          %p392 = pneg %p241
        $region22: #{tpu_custom_call.1} parent=11 // pred_check_branch
          %394 = sbr.rel (%p392) target = $region24
        $region23: #{tpu_custom_call.1} parent=11 // pred_region
          _
        $region24: #{tpu_custom_call.1} parent=11 // pred_fallthru
          _
        // Predicated region
        $region25: #{tpu_custom_call.1} parent=11 // pred_check
          %p395 = pneg %p288
        $region26: #{tpu_custom_call.1} parent=11 // pred_check_branch
          %397 = sbr.rel (%p395) target = $region28
        $region27: #{tpu_custom_call.1} parent=11 // pred_region
          _
        $region28: #{tpu_custom_call.1} parent=11 // pred_fallthru
          _
        // Predicated region
        $region29: #{tpu_custom_call.1} parent=11 // pred_check
          %p398 = pneg %p309
        $region30: #{tpu_custom_call.1} parent=11 // pred_check_branch
          %400 = sbr.rel (%p398) target = $region32
        $region31: #{tpu_custom_call.1} parent=11 // pred_region
          %s402 = ssub.s32 1024, 1024
          %403 = vsyncadd [#allocation8], %s402
          %s404 = sshll.u32 [#allocation12], 4
          %s405 = int_to_ptr.vmem [resolvable:$true] %s404
          %410 = dma.hbm_to_vmem [thread:$0]  %s11, 1024, %s405, [#allocation8], 64, 64, 4
        $region32: #{tpu_custom_call.1} parent=11 // pred_fallthru
          _
        // Predicated region
        $region33: #{tpu_custom_call.1} parent=11 // pred_check
          %p411 = pneg %p330
        $region34: #{tpu_custom_call.1} parent=11 // pred_check_branch
          %413 = sbr.rel (%p411) target = $region36
        $region35: #{tpu_custom_call.1} parent=11 // pred_region
          _
        $region36: #{tpu_custom_call.1} parent=11 // pred_fallthru
          _
      $region12: #{tpu_custom_call.1} parent=5 // pred_fallthru
        _
      %p414 = scmp.lt.s32.totalorder %s22, 3
      // Predicated region
      $region37: #{tpu_custom_call.1} parent=5 // pred_check
        %p415 = pneg %p414
      $region38: #{tpu_custom_call.1} parent=5 // pred_check_branch
        %417 = sbr.rel (%p415) target = $region40
      $region39: #{tpu_custom_call.1} parent=5 // pred_region
        // Predicated region
        $region41: #{tpu_custom_call.1} parent=39 // pred_check
          %p418 = pneg %p84
        $region42: #{tpu_custom_call.1} parent=39 // pred_check_branch
          %420 = sbr.rel (%p418) target = $region44
        $region43: #{tpu_custom_call.1} parent=39 // pred_region
          %s421 = sand.u32 %s22, 1
          %s422 = scalar_lea.sflag [#allocation5], %s421
          %s423 = sand.u32 %s74, 1
          %s424 = smul.addr %s423, 64
          %s425 = scalar_lea.vmem [#allocation9], %s424
          %s427 = ssub.s32 1024, 1024
          %428 = vsyncadd %s422, %s427
          %s429 = smul.addr %s22, 16
          %s430 = smul.addr %s429, 64
          %s431 = scalar_lea.hbm %s2, %s430
          %s432 = sshll.u32 %s425, 4
          %s433 = int_to_ptr.vmem [resolvable:$true] %s432
          %438 = dma.hbm_to_vmem [thread:$0]  %s431, 1024, %s433, %s422, 64, 64, 4
        $region44: #{tpu_custom_call.1} parent=39 // pred_fallthru
          _
        // Predicated region
        $region45: #{tpu_custom_call.1} parent=39 // pred_check
          %p439 = pneg %p110
        $region46: #{tpu_custom_call.1} parent=39 // pred_check_branch
          %441 = sbr.rel (%p439) target = $region48
        $region47: #{tpu_custom_call.1} parent=39 // pred_region
          %p442 = scmp.lt.s32.totalorder %s22, 2
          %s443 = scalar_select %p442, %s22, 2
          %s444 = scalar_lea.vmem %s3, %s443
        $region48: #{tpu_custom_call.1} parent=39 // pred_fallthru
          _
        // Predicated region
        $region49: #{tpu_custom_call.1} parent=39 // pred_check
          %p445 = pneg %p136
        $region50: #{tpu_custom_call.1} parent=39 // pred_check_branch
          %447 = sbr.rel (%p445) target = $region52
        $region51: #{tpu_custom_call.1} parent=39 // pred_region
          %s448 = sand.u32 %s22, 1
          %s449 = scalar_lea.sflag [#allocation5], %s448
          %s450 = sand.u32 %s126, 1
          %s451 = smul.addr %s450, 64
          %s452 = scalar_lea.vmem [#allocation10], %s451
          %s454 = ssub.s32 1024, 1024
          %455 = vsyncadd %s449, %s454
          %s456 = smul.addr %s22, 16
          %s457 = smul.addr %s456, 64
          %s458 = scalar_lea.hbm %s4, %s457
          %s459 = sshll.u32 %s452, 4
          %s460 = int_to_ptr.vmem [resolvable:$true] %s459
          %465 = dma.hbm_to_vmem [thread:$0]  %s458, 1024, %s460, %s449, 64, 64, 4
        $region52: #{tpu_custom_call.1} parent=39 // pred_fallthru
          _
        // Predicated region
        $region53: #{tpu_custom_call.1} parent=39 // pred_check
          %p466 = pneg %p162
        $region54: #{tpu_custom_call.1} parent=39 // pred_check_branch
          %468 = sbr.rel (%p466) target = $region56
        $region55: #{tpu_custom_call.1} parent=39 // pred_region
          %p469 = scmp.lt.s32.totalorder %s22, 2
          %s470 = scalar_select %p469, %s22, 2
          %s471 = scalar_lea.vmem %s5, %s470
        $region56: #{tpu_custom_call.1} parent=39 // pred_fallthru
          _
        // Predicated region
        $region57: #{tpu_custom_call.1} parent=39 // pred_check
          %p472 = pneg %p188
        $region58: #{tpu_custom_call.1} parent=39 // pred_check_branch
          %474 = sbr.rel (%p472) target = $region60
        $region59: #{tpu_custom_call.1} parent=39 // pred_region
          %p475 = scmp.lt.s32.totalorder %s22, 2
          %s476 = scalar_select %p475, %s22, 2
          %s477 = scalar_lea.vmem %s6, %s476
        $region60: #{tpu_custom_call.1} parent=39 // pred_fallthru
          _
        // Predicated region
        $region61: #{tpu_custom_call.1} parent=39 // pred_check
          %p478 = pneg %p214
        $region62: #{tpu_custom_call.1} parent=39 // pred_check_branch
          %480 = sbr.rel (%p478) target = $region64
        $region63: #{tpu_custom_call.1} parent=39 // pred_region
          %p481 = scmp.lt.s32.totalorder %s22, 2
          %s482 = scalar_select %p481, %s22, 2
          %s483 = scalar_lea.vmem %s7, %s482
        $region64: #{tpu_custom_call.1} parent=39 // pred_fallthru
          _
        // Predicated region
        $region65: #{tpu_custom_call.1} parent=39 // pred_check
          %p484 = pneg %p261
        $region66: #{tpu_custom_call.1} parent=39 // pred_check_branch
          %486 = sbr.rel (%p484) target = $region68
        $region67: #{tpu_custom_call.1} parent=39 // pred_region
          %s487 = sand.u32 %s22, 1
          %s488 = scalar_lea.sflag [#allocation5], %s487
          %s489 = sand.u32 %s251, 1
          %s490 = smul.addr %s489, 64
          %s491 = scalar_lea.vmem [#allocation11], %s490
          %s493 = ssub.s32 1024, 1024
          %494 = vsyncadd %s488, %s493
          %s495 = smul.addr %s22, 16
          %s496 = smul.addr %s495, 64
          %s497 = scalar_lea.hbm %s9, %s496
          %s498 = sshll.u32 %s491, 4
          %s499 = int_to_ptr.vmem [resolvable:$true] %s498
          %504 = dma.hbm_to_vmem [thread:$0]  %s497, 1024, %s499, %s488, 64, 64, 4
        $region68: #{tpu_custom_call.1} parent=39 // pred_fallthru
          _
      $region40: #{tpu_custom_call.1} parent=5 // pred_fallthru
        _
      %p505 = scmp.le.s32.totalorder 1, %s22
      %p506 = scmp.lt.s32.totalorder %s22, 4
      %p507 = pnand %p505, %p506
      %p508 = pneg %p507
      // Predicated region
      $region69: #{tpu_custom_call.1} parent=5 // pred_check
        _
      $region70: #{tpu_custom_call.1} parent=5 // pred_check_branch
        %510 = sbr.rel (%p507) target = $region72
      $region71: #{tpu_custom_call.1} parent=5 // pred_region
        %s511 = ssub.s32 %s22, 1
        // Predicated region
        $region73: #{tpu_custom_call.1} parent=71 // pred_check
          %p512 = pneg %p43
        $region74: #{tpu_custom_call.1} parent=71 // pred_check_branch
          %514 = sbr.rel (%p512) target = $region76
        $region75: #{tpu_custom_call.1} parent=71 // pred_region
          %515 = dma.done [#allocation5], 1024
        $region76: #{tpu_custom_call.1} parent=71 // pred_fallthru
          _
        // Predicated region
        $region77: #{tpu_custom_call.1} parent=71 // pred_check
          %p516 = pneg %p64
        $region78: #{tpu_custom_call.1} parent=71 // pred_check_branch
          %518 = sbr.rel (%p516) target = $region80
        $region79: #{tpu_custom_call.1} parent=71 // pred_region
          %519 = dma.done [#allocation8], 1024
        $region80: #{tpu_custom_call.1} parent=71 // pred_fallthru
          _
        %s520 = sand.u32 %s27, 1
        %s521 = scalar_lea.sflag [#allocation5], %s520
        %s522 = sand.u32 %s77, 1
        %s523 = smul.addr %s522, 64
        %s524 = scalar_lea.vmem [#allocation9], %s523
        // Predicated region
        $region81: #{tpu_custom_call.1} parent=71 // pred_check
          %p525 = pneg %p90
        $region82: #{tpu_custom_call.1} parent=71 // pred_check_branch
          %527 = sbr.rel (%p525) target = $region84
        $region83: #{tpu_custom_call.1} parent=71 // pred_region
          %528 = dma.done %s521, 1024
        $region84: #{tpu_custom_call.1} parent=71 // pred_fallthru
          _
        %s529 = sand.u32 %s27, 1
        %s530 = scalar_lea.sflag [#allocation5], %s529
        %s531 = sand.u32 %s129, 1
        %s532 = smul.addr %s531, 64
        %s533 = scalar_lea.vmem [#allocation10], %s532
        // Predicated region
        $region85: #{tpu_custom_call.1} parent=71 // pred_check
          %p534 = pneg %p142
        $region86: #{tpu_custom_call.1} parent=71 // pred_check_branch
          %536 = sbr.rel (%p534) target = $region88
        $region87: #{tpu_custom_call.1} parent=71 // pred_region
          %537 = dma.done %s530, 1024
        $region88: #{tpu_custom_call.1} parent=71 // pred_fallthru
          _
        %s538 = sand.u32 %s27, 1
        %s539 = scalar_lea.sflag [#allocation5], %s538
        %s540 = sand.u32 %s254, 1
        %s541 = smul.addr %s540, 64
        %s542 = scalar_lea.vmem [#allocation11], %s541
        // Predicated region
        $region89: #{tpu_custom_call.1} parent=71 // pred_check
          %p543 = pneg %p267
        $region90: #{tpu_custom_call.1} parent=71 // pred_check_branch
          %545 = sbr.rel (%p543) target = $region92
        $region91: #{tpu_custom_call.1} parent=71 // pred_region
          %546 = dma.done %s539, 1024
        $region92: #{tpu_custom_call.1} parent=71 // pred_fallthru
          _
        // Predicated region
        $region93: #{tpu_custom_call.1} parent=71 // pred_check
          %p547 = pneg %p309
        $region94: #{tpu_custom_call.1} parent=71 // pred_check_branch
          %549 = sbr.rel (%p547) target = $region96
        $region95: #{tpu_custom_call.1} parent=71 // pred_region
          %550 = dma.done [#allocation8], 1024
        $region96: #{tpu_custom_call.1} parent=71 // pred_fallthru
          _
        %p551 = pneg %p43
        %p552 = pneg %p40
        %p553 = pneg %p64
        %p554 = pneg %p61
        %s555 = sand.u32 %s27, 1
        %s556 = scalar_lea.sflag [#allocation5], %s555
        %s557 = sand.u32 %s77, 1
        %s558 = smul.addr %s557, 64
        %s559 = scalar_lea.vmem [#allocation9], %s558
        %p560 = pneg %p90
        %p561 = pneg %p87
        %p562 = scmp.lt.s32.totalorder %s27, 2
        %s563 = scalar_select %p562, %s27, 2
        %s564 = scalar_lea.vmem %s3, %s563
        %p565 = pneg %p116
        %p566 = pneg %p113
        %s567 = sand.u32 %s27, 1
        %s568 = scalar_lea.sflag [#allocation5], %s567
        %s569 = sand.u32 %s129, 1
        %s570 = smul.addr %s569, 64
        %s571 = scalar_lea.vmem [#allocation10], %s570
        %p572 = pneg %p142
        %p573 = pneg %p139
        %p574 = scmp.lt.s32.totalorder %s27, 2
        %s575 = scalar_select %p574, %s27, 2
        %s576 = scalar_lea.vmem %s5, %s575
        %p577 = pneg %p168
        %p578 = pneg %p165
        %p579 = scmp.lt.s32.totalorder %s27, 2
        %s580 = scalar_select %p579, %s27, 2
        %s581 = scalar_lea.vmem %s6, %s580
        %p582 = pneg %p194
        %p583 = pneg %p191
        %p584 = scmp.lt.s32.totalorder %s27, 2
        %s585 = scalar_select %p584, %s27, 2
        %s586 = scalar_lea.vmem %s7, %s585
        %p587 = pneg %p220
        %p588 = pneg %p217
        %p589 = pneg %p241
        %p590 = pneg %p238
        %s591 = sand.u32 %s27, 1
        %s592 = scalar_lea.sflag [#allocation5], %s591
        %s593 = sand.u32 %s254, 1
        %s594 = smul.addr %s593, 64
        %s595 = scalar_lea.vmem [#allocation11], %s594
        %p596 = pneg %p267
        %p597 = pneg %p264
        %p598 = pneg %p288
        %p599 = pneg %p285
        %p600 = pneg %p309
        %p601 = pneg %p306
        %p602 = pneg %p330
        %p603 = pneg %p327
        %p604 = pneg %p351
        %p605 = pneg %p348
        %p606 = scmp.lt.s32.totalorder %s27, 2
        %s607 = scalar_select %p606, %s27, 2
        %s608 = scalar_lea.vmem %s3, %s607
        %p609 = scmp.lt.s32.totalorder %s27, 2
        %s610 = scalar_select %p609, %s27, 2
        %s611 = scalar_lea.vmem %s5, %s610
        %p612 = scmp.lt.s32.totalorder %s27, 2
        %s613 = scalar_select %p612, %s27, 2
        %s614 = scalar_lea.vmem %s6, %s613
        %p615 = scmp.lt.s32.totalorder %s27, 2
        %s616 = scalar_select %p615, %s27, 2
        %s617 = scalar_lea.vmem %s7, %s616
        %p619 = scmp.eq.s32.totalorder %s27, 0
        // Predicated region
        $region97: #{tpu_custom_call.1} parent=71 // pred_check
          %p620 = pneg %p619
        $region98: #{tpu_custom_call.1} parent=71 // pred_check_branch
          %622 = sbr.rel (%p620) target = $region100
        $region99: #{tpu_custom_call.1} parent=71 // pred_region
          %v623 = vld [vmem:[#allocation7] sm:$0xf]
          %v624 = vld [vmem:[#allocation7 + $0x4] sm:$0xf]
          %v625 = vld [vmem:[#allocation7 + $0x8] sm:$0xf]
          %v626 = vld [vmem:[#allocation7 + $0xc] sm:$0xf]
          %v627 = vld [vmem:[#allocation7 + $0x10] sm:$0xf]
          %v628 = vld [vmem:[#allocation7 + $0x14] sm:$0xf]
          %v629 = vld [vmem:[#allocation7 + $0x18] sm:$0xf]
          %v630 = vld [vmem:[#allocation7 + $0x1c] sm:$0xf]
          %v631 = vld [vmem:[#allocation7 + $0x20] sm:$0xf]
          %v632 = vld [vmem:[#allocation7 + $0x24] sm:$0xf]
          %v633 = vld [vmem:[#allocation7 + $0x28] sm:$0xf]
          %v634 = vld [vmem:[#allocation7 + $0x2c] sm:$0xf]
          %v635 = vld [vmem:[#allocation7 + $0x30] sm:$0xf]
          %v636 = vld [vmem:[#allocation7 + $0x34] sm:$0xf]
          %v637 = vld [vmem:[#allocation7 + $0x38] sm:$0xf]
          %v638 = vld [vmem:[#allocation7 + $0x3c] sm:$0xf]
          %v655 = vunpack.c.l.b16 %v623
          %v656 = vunpack.c.l.b16 %v624
          %v657 = vunpack.c.l.b16 %v625
          %v658 = vunpack.c.l.b16 %v626
          %v659 = vunpack.c.l.b16 %v627
          %v660 = vunpack.c.l.b16 %v628
          %v661 = vunpack.c.l.b16 %v629
          %v662 = vunpack.c.l.b16 %v630
          %v663 = vunpack.c.l.b16 %v631
          %v664 = vunpack.c.l.b16 %v632
          %v665 = vunpack.c.l.b16 %v633
          %v666 = vunpack.c.l.b16 %v634
          %v667 = vunpack.c.l.b16 %v635
          %v668 = vunpack.c.l.b16 %v636
          %v669 = vunpack.c.l.b16 %v637
          %v670 = vunpack.c.l.b16 %v638
          %v671 = vpack.c.b16 %v656, %v655
          %v672 = vpack.c.b16 %v658, %v657
          %v673 = vpack.c.b16 %v660, %v659
          %v674 = vpack.c.b16 %v662, %v661
          %v675 = vpack.c.b16 %v664, %v663
          %v676 = vpack.c.b16 %v666, %v665
          %v677 = vpack.c.b16 %v668, %v667
          %v678 = vpack.c.b16 %v670, %v669
          %687 = vst [vmem:[#allocation2] sm:$0xff] %v671
          %688 = vst [vmem:[#allocation2 + $0x8] sm:$0xff] %v672
          %689 = vst [vmem:[#allocation2 + $0x10] sm:$0xff] %v673
          %690 = vst [vmem:[#allocation2 + $0x18] sm:$0xff] %v674
          %691 = vst [vmem:[#allocation2 + $0x20] sm:$0xff] %v675
          %692 = vst [vmem:[#allocation2 + $0x28] sm:$0xff] %v676
          %693 = vst [vmem:[#allocation2 + $0x30] sm:$0xff] %v677
          %694 = vst [vmem:[#allocation2 + $0x38] sm:$0xff] %v678
          %695 = vst [vmem:[#allocation3] sm:$0xff] 0.0
        $region100: #{tpu_custom_call.1} parent=71 // pred_fallthru
          _
        %v696 = vlaneseq
        %v697 = vshrl.u32 %v696, 7
        %v698 = vadd.s32 %v697, 8
        %v699 = vadd.s32 %v697, 16
        %v700 = vadd.s32 %v697, 24
        %v701 = vadd.s32 %v697, 32
        %v702 = vadd.s32 %v697, 40
        %v703 = vadd.s32 %v697, 48
        %v704 = vadd.s32 %v697, 56
        %v705 = vadd.s32 %v697, 64
        %v706 = vadd.s32 %v697, 72
        %v707 = vadd.s32 %v697, 80
        %v708 = vadd.s32 %v697, 88
        %v709 = vadd.s32 %v697, 96
        %v710 = vadd.s32 %v697, 104
        %v711 = vadd.s32 %v697, 112
        %v712 = vadd.s32 %v697, 120
        %vm713 = vcmp.lt.s32.totalorder %v697, 12
        %vm714 = vcmp.lt.s32.totalorder %v698, 12
        %vm715 = vcmp.lt.s32.totalorder %v699, 12
        %vm716 = vcmp.lt.s32.totalorder %v700, 12
        %vm717 = vcmp.lt.s32.totalorder %v701, 12
        %vm718 = vcmp.lt.s32.totalorder %v702, 12
        %vm719 = vcmp.lt.s32.totalorder %v703, 12
        %vm720 = vcmp.lt.s32.totalorder %v704, 12
        %vm721 = vcmp.lt.s32.totalorder %v705, 12
        %vm722 = vcmp.lt.s32.totalorder %v706, 12
        %vm723 = vcmp.lt.s32.totalorder %v707, 12
        %vm724 = vcmp.lt.s32.totalorder %v708, 12
        %vm725 = vcmp.lt.s32.totalorder %v709, 12
        %vm726 = vcmp.lt.s32.totalorder %v710, 12
        %vm727 = vcmp.lt.s32.totalorder %v711, 12
        %vm728 = vcmp.lt.s32.totalorder %v712, 12
        %v729 = vsel %vm713, 1, 0
        %v730 = vsel %vm714, 1, 0
        %v731 = vsel %vm715, 1, 0
        %v732 = vsel %vm716, 1, 0
        %v733 = vsel %vm717, 1, 0
        %v734 = vsel %vm718, 1, 0
        %v735 = vsel %vm719, 1, 0
        %v736 = vsel %vm720, 1, 0
        %v737 = vsel %vm721, 1, 0
        %v738 = vsel %vm722, 1, 0
        %v739 = vsel %vm723, 1, 0
        %v740 = vsel %vm724, 1, 0
        %v741 = vsel %vm725, 1, 0
        %v742 = vsel %vm726, 1, 0
        %v743 = vsel %vm727, 1, 0
        %v744 = vsel %vm728, 1, 0
        %v745 = vcvt.s32.f32 %v729
        %v746 = vcvt.s32.f32 %v730
        %v747 = vcvt.s32.f32 %v731
        %v748 = vcvt.s32.f32 %v732
        %v749 = vcvt.s32.f32 %v733
        %v750 = vcvt.s32.f32 %v734
        %v751 = vcvt.s32.f32 %v735
        %v752 = vcvt.s32.f32 %v736
        %v753 = vcvt.s32.f32 %v737
        %v754 = vcvt.s32.f32 %v738
        %v755 = vcvt.s32.f32 %v739
        %v756 = vcvt.s32.f32 %v740
        %v757 = vcvt.s32.f32 %v741
        %v758 = vcvt.s32.f32 %v742
        %v759 = vcvt.s32.f32 %v743
        %v760 = vcvt.s32.f32 %v744
        %v761 = vld [vmem:[#allocation2] sm:$0xff]
        %v762 = vld [vmem:[#allocation2 + $0x8] sm:$0xff]
        %v763 = vld [vmem:[#allocation2 + $0x10] sm:$0xff]
        %v764 = vld [vmem:[#allocation2 + $0x18] sm:$0xff]
        %v765 = vld [vmem:[#allocation2 + $0x20] sm:$0xff]
        %v766 = vld [vmem:[#allocation2 + $0x28] sm:$0xff]
        %v767 = vld [vmem:[#allocation2 + $0x30] sm:$0xff]
        %v768 = vld [vmem:[#allocation2 + $0x38] sm:$0xff]
        %v769 = vld [vmem:[#allocation4] sm:$0xf]
        %v770 = vld [vmem:[#allocation4 + $0x4] sm:$0xf]
        %v771 = vld [vmem:[#allocation4 + $0x8] sm:$0xf]
        %v772 = vld [vmem:[#allocation4 + $0xc] sm:$0xf]
        %v773 = vld [vmem:[#allocation4 + $0x10] sm:$0xf]
        %v774 = vld [vmem:[#allocation4 + $0x14] sm:$0xf]
        %v775 = vld [vmem:[#allocation4 + $0x18] sm:$0xf]
        %v776 = vld [vmem:[#allocation4 + $0x1c] sm:$0xf]
        %v777 = vld [vmem:[#allocation4 + $0x20] sm:$0xf]
        %v778 = vld [vmem:[#allocation4 + $0x24] sm:$0xf]
        %v779 = vld [vmem:[#allocation4 + $0x28] sm:$0xf]
        %v780 = vld [vmem:[#allocation4 + $0x2c] sm:$0xf]
        %v781 = vld [vmem:[#allocation4 + $0x30] sm:$0xf]
        %v782 = vld [vmem:[#allocation4 + $0x34] sm:$0xf]
        %v783 = vld [vmem:[#allocation4 + $0x38] sm:$0xf]
        %v784 = vld [vmem:[#allocation4 + $0x3c] sm:$0xf]
        %v801 = vunpack.c.l.b16 %v769
        %v802 = vunpack.c.l.b16 %v770
        %v803 = vunpack.c.l.b16 %v771
        %v804 = vunpack.c.l.b16 %v772
        %v805 = vunpack.c.l.b16 %v773
        %v806 = vunpack.c.l.b16 %v774
        %v807 = vunpack.c.l.b16 %v775
        %v808 = vunpack.c.l.b16 %v776
        %v809 = vunpack.c.l.b16 %v777
        %v810 = vunpack.c.l.b16 %v778
        %v811 = vunpack.c.l.b16 %v779
        %v812 = vunpack.c.l.b16 %v780
        %v813 = vunpack.c.l.b16 %v781
        %v814 = vunpack.c.l.b16 %v782
        %v815 = vunpack.c.l.b16 %v783
        %v816 = vunpack.c.l.b16 %v784
        %v817 = vpack.c.b16 %v802, %v801
        %v818 = vpack.c.b16 %v804, %v803
        %v819 = vpack.c.b16 %v806, %v805
        %v820 = vpack.c.b16 %v808, %v807
        %v821 = vpack.c.b16 %v810, %v809
        %v822 = vpack.c.b16 %v812, %v811
        %v823 = vpack.c.b16 %v814, %v813
        %v824 = vpack.c.b16 %v816, %v815
        %833 = vmatprep.subr.bf16.mxu0 0
        %834 = vmatpush1.bf16.msra.mxu0 %v761
        %835 = vmatprep.subr.bf16.mxu0 0
        %836 = vmatpush1.bf16.msra.mxu0 %v762
        %837 = vmatprep.subr.bf16.mxu0 0
        %838 = vmatpush1.bf16.msra.mxu0 %v763
        %839 = vmatprep.subr.bf16.mxu0 0
        %840 = vmatpush1.bf16.msra.mxu0 %v764
        %841 = vmatprep.subr.bf16.mxu0 0
        %842 = vmatpush1.bf16.msra.mxu0 %v765
        %843 = vmatprep.subr.bf16.mxu0 0
        %844 = vmatpush1.bf16.msra.mxu0 %v766
        %845 = vmatprep.subr.bf16.mxu0 0
        %846 = vmatpush1.bf16.msra.mxu0 %v767
        %847 = vmatprep.subr.bf16.mxu0 0
        %848 = vmatpush1.bf16.msra.mxu0 %v768
        %849 = vmatprep.subr.bf16.mxu0 0
        %850 = vmatpush1.bf16.msra.mxu0 0
        %851 = vmatprep.subr.bf16.mxu0 0
        %852 = vmatpush1.bf16.msra.mxu0 0
        %853 = vmatprep.subr.bf16.mxu0 0
        %854 = vmatpush1.bf16.msra.mxu0 0
        %855 = vmatprep.subr.bf16.mxu0 0
        %856 = vmatpush1.bf16.msra.mxu0 0
        %857 = vmatprep.subr.bf16.mxu0 0
        %858 = vmatpush1.bf16.msra.mxu0 0
        %859 = vmatprep.subr.bf16.mxu0 0
        %860 = vmatpush1.bf16.msra.mxu0 0
        %861 = vmatprep.subr.bf16.mxu0 0
        %862 = vmatpush1.bf16.msra.mxu0 0
        %863 = vmatprep.subr.bf16.mxu0 0
        %864 = vmatpush1.bf16.msra.mxu0 0
        %865 = vmatprep.mubr.bf16.mxu0 0
        %866 = vmatmul.mubr.bf16.gmra.mrb[0].mxu0 %v817
        %v867 = vpop.f32.mrb[0].mxu0
        %v868 = vadd.f32 0.0, %v867
        %v869 = vpop.f32.mrb[0].mxu0
        %v870 = vpop.f32.mrb[0].mxu0
        %v871 = vadd.f32 0.0, %v870
        %v872 = vpop.f32.mrb[0].mxu0
        %873 = vmatprep.mubr.bf16.mxu0 0
        %874 = vmatmul.mubr.bf16.gmra.mrb[0].mxu0 %v818
        %v875 = vpop.f32.mrb[0].mxu0
        %v876 = vadd.f32 0.0, %v875
        %v877 = vpop.f32.mrb[0].mxu0
        %v878 = vpop.f32.mrb[0].mxu0
        %v879 = vadd.f32 0.0, %v878
        %v880 = vpop.f32.mrb[0].mxu0
        %881 = vmatprep.mubr.bf16.mxu0 0
        %882 = vmatmul.mubr.bf16.gmra.mrb[0].mxu0 %v819
        %v883 = vpop.f32.mrb[0].mxu0
        %v884 = vadd.f32 0.0, %v883
        %v885 = vpop.f32.mrb[0].mxu0
        %v886 = vpop.f32.mrb[0].mxu0
        %v887 = vadd.f32 0.0, %v886
        %v888 = vpop.f32.mrb[0].mxu0
        %889 = vmatprep.mubr.bf16.mxu0 0
        %890 = vmatmul.mubr.bf16.gmra.mrb[0].mxu0 %v820
        %v891 = vpop.f32.mrb[0].mxu0
        %v892 = vadd.f32 0.0, %v891
        %v893 = vpop.f32.mrb[0].mxu0
        %v894 = vpop.f32.mrb[0].mxu0
        %v895 = vadd.f32 0.0, %v894
        %v896 = vpop.f32.mrb[0].mxu0
        %897 = vmatprep.mubr.bf16.mxu0 0
        %898 = vmatmul.mubr.bf16.gmra.mrb[0].mxu0 %v821
        %v899 = vpop.f32.mrb[0].mxu0
        %v900 = vadd.f32 0.0, %v899
        %v901 = vpop.f32.mrb[0].mxu0
        %v902 = vpop.f32.mrb[0].mxu0
        %v903 = vadd.f32 0.0, %v902
        %v904 = vpop.f32.mrb[0].mxu0
        %905 = vmatprep.mubr.bf16.mxu0 0
        %906 = vmatmul.mubr.bf16.gmra.mrb[0].mxu0 %v822
        %v907 = vpop.f32.mrb[0].mxu0
        %v908 = vadd.f32 0.0, %v907
        %v909 = vpop.f32.mrb[0].mxu0
        %v910 = vpop.f32.mrb[0].mxu0
        %v911 = vadd.f32 0.0, %v910
        %v912 = vpop.f32.mrb[0].mxu0
        %913 = vmatprep.mubr.bf16.mxu0 0
        %914 = vmatmul.mubr.bf16.gmra.mrb[0].mxu0 %v823
        %v915 = vpop.f32.mrb[0].mxu0
        %v916 = vadd.f32 0.0, %v915
        %v917 = vpop.f32.mrb[0].mxu0
        %v918 = vpop.f32.mrb[0].mxu0
        %v919 = vadd.f32 0.0, %v918
        %v920 = vpop.f32.mrb[0].mxu0
        %921 = vmatprep.mubr.bf16.mxu0 0
        %922 = vmatmul.mubr.bf16.gmra.mrb[0].mxu0 %v824
        %v923 = vpop.f32.mrb[0].mxu0
        %v924 = vadd.f32 0.0, %v923
        %v925 = vpop.f32.mrb[0].mxu0
        %v926 = vpop.f32.mrb[0].mxu0
        %v927 = vadd.f32 0.0, %v926
        %v928 = vpop.f32.mrb[0].mxu0
        %929 = vdwg.mxu0
        %v930 = vpack.c.bf16 %v871, %v868
        %v931 = vpack.c.bf16 %v879, %v876
        %v932 = vpack.c.bf16 %v887, %v884
        %v933 = vpack.c.bf16 %v895, %v892
        %v934 = vpack.c.bf16 %v903, %v900
        %v935 = vpack.c.bf16 %v911, %v908
        %v936 = vpack.c.bf16 %v919, %v916
        %v937 = vpack.c.bf16 %v927, %v924
        %v938 = vld [vmem:[%s524] sm:$0xf]
        %v939 = vld [vmem:[%s524 + $0x4] sm:$0xf]
        %v940 = vld [vmem:[%s524 + $0x8] sm:$0xf]
        %v941 = vld [vmem:[%s524 + $0xc] sm:$0xf]
        %v942 = vld [vmem:[%s524 + $0x10] sm:$0xf]
        %v943 = vld [vmem:[%s524 + $0x14] sm:$0xf]
        %v944 = vld [vmem:[%s524 + $0x18] sm:$0xf]
        %v945 = vld [vmem:[%s524 + $0x1c] sm:$0xf]
        %v946 = vld [vmem:[%s524 + $0x20] sm:$0xf]
        %v947 = vld [vmem:[%s524 + $0x24] sm:$0xf]
        %v948 = vld [vmem:[%s524 + $0x28] sm:$0xf]
        %v949 = vld [vmem:[%s524 + $0x2c] sm:$0xf]
        %v950 = vld [vmem:[%s524 + $0x30] sm:$0xf]
        %v951 = vld [vmem:[%s524 + $0x34] sm:$0xf]
        %v952 = vld [vmem:[%s524 + $0x38] sm:$0xf]
        %v953 = vld [vmem:[%s524 + $0x3c] sm:$0xf]
        %v954 = vld [vmem:[%s608] sm:$0x1]
        %v956 = vlaneseq
        %v957 = vshrl.u32 %v956, 7
        %v958 = vsub.s32 0, %v957
        %v959 = vrot.slane %v954, %v958
        %v977 = vunpack.c.l.b16 %v938
        %v978 = vunpack.c.l.b16 %v939
        %v979 = vunpack.c.l.b16 %v940
        %v980 = vunpack.c.l.b16 %v941
        %v981 = vunpack.c.l.b16 %v942
        %v982 = vunpack.c.l.b16 %v943
        %v983 = vunpack.c.l.b16 %v944
        %v984 = vunpack.c.l.b16 %v945
        %v985 = vunpack.c.l.b16 %v946
        %v986 = vunpack.c.l.b16 %v947
        %v987 = vunpack.c.l.b16 %v948
        %v988 = vunpack.c.l.b16 %v949
        %v989 = vunpack.c.l.b16 %v950
        %v990 = vunpack.c.l.b16 %v951
        %v991 = vunpack.c.l.b16 %v952
        %v992 = vunpack.c.l.b16 %v953
        %v993 = vpack.c.b16 %v978, %v977
        %v994 = vpack.c.b16 %v980, %v979
        %v995 = vpack.c.b16 %v982, %v981
        %v996 = vpack.c.b16 %v984, %v983
        %v997 = vpack.c.b16 %v986, %v985
        %v998 = vpack.c.b16 %v988, %v987
        %v999 = vpack.c.b16 %v990, %v989
        %v1000 = vpack.c.b16 %v992, %v991
        %1009 = vmatprep.subr.bf16.mxu0 0
        %1010 = vmatpush1.bf16.msra.mxu0 %v993
        %1011 = vmatprep.subr.bf16.mxu0 0
        %1012 = vmatpush1.bf16.msra.mxu0 %v994
        %1013 = vmatprep.subr.bf16.mxu0 0
        %1014 = vmatpush1.bf16.msra.mxu0 %v995
        %1015 = vmatprep.subr.bf16.mxu0 0
        %1016 = vmatpush1.bf16.msra.mxu0 %v996
        %1017 = vmatprep.subr.bf16.mxu0 0
        %1018 = vmatpush1.bf16.msra.mxu0 %v997
        %1019 = vmatprep.subr.bf16.mxu0 0
        %1020 = vmatpush1.bf16.msra.mxu0 %v998
        %1021 = vmatprep.subr.bf16.mxu0 0
        %1022 = vmatpush1.bf16.msra.mxu0 %v999
        %1023 = vmatprep.subr.bf16.mxu0 0
        %1024 = vmatpush1.bf16.msra.mxu0 %v1000
        %1025 = vmatprep.subr.bf16.mxu0 0
        %1026 = vmatpush1.bf16.msra.mxu0 0
        %1027 = vmatprep.subr.bf16.mxu0 0
        %1028 = vmatpush1.bf16.msra.mxu0 0
        %1029 = vmatprep.subr.bf16.mxu0 0
        %1030 = vmatpush1.bf16.msra.mxu0 0
        %1031 = vmatprep.subr.bf16.mxu0 0
        %1032 = vmatpush1.bf16.msra.mxu0 0
        %1033 = vmatprep.subr.bf16.mxu0 0
        %1034 = vmatpush1.bf16.msra.mxu0 0
        %1035 = vmatprep.subr.bf16.mxu0 0
        %1036 = vmatpush1.bf16.msra.mxu0 0
        %1037 = vmatprep.subr.bf16.mxu0 0
        %1038 = vmatpush1.bf16.msra.mxu0 0
        %1039 = vmatprep.subr.bf16.mxu0 0
        %1040 = vmatpush1.bf16.msra.mxu0 0
        %1041 = vmatprep.mubr.bf16.mxu0 0
        %1042 = vmatmul.mubr.bf16.gmra.mrb[0].mxu0 %v930
        %v1043 = vpop.f32.mrb[0].mxu0
        %v1044 = vadd.f32 %v959, %v1043
        %v1045 = vpop.f32.mrb[0].mxu0
        %v1046 = vpop.f32.mrb[0].mxu0
        %v1047 = vadd.f32 %v959, %v1046
        %v1048 = vpop.f32.mrb[0].mxu0
        %1049 = vmatprep.mubr.bf16.mxu0 0
        %1050 = vmatmul.mubr.bf16.gmra.mrb[0].mxu0 %v931
        %v1051 = vpop.f32.mrb[0].mxu0
        %v1052 = vadd.f32 %v959, %v1051
        %v1053 = vpop.f32.mrb[0].mxu0
        %v1054 = vpop.f32.mrb[0].mxu0
        %v1055 = vadd.f32 %v959, %v1054
        %v1056 = vpop.f32.mrb[0].mxu0
        %1057 = vmatprep.mubr.bf16.mxu0 0
        %1058 = vmatmul.mubr.bf16.gmra.mrb[0].mxu0 %v932
        %v1059 = vpop.f32.mrb[0].mxu0
        %v1060 = vadd.f32 %v959, %v1059
        %v1061 = vpop.f32.mrb[0].mxu0
        %v1062 = vpop.f32.mrb[0].mxu0
        %v1063 = vadd.f32 %v959, %v1062
        %v1064 = vpop.f32.mrb[0].mxu0
        %1065 = vmatprep.mubr.bf16.mxu0 0
        %1066 = vmatmul.mubr.bf16.gmra.mrb[0].mxu0 %v933
        %v1067 = vpop.f32.mrb[0].mxu0
        %v1068 = vadd.f32 %v959, %v1067
        %v1069 = vpop.f32.mrb[0].mxu0
        %v1070 = vpop.f32.mrb[0].mxu0
        %v1071 = vadd.f32 %v959, %v1070
        %v1072 = vpop.f32.mrb[0].mxu0
        %1073 = vmatprep.mubr.bf16.mxu0 0
        %1074 = vmatmul.mubr.bf16.gmra.mrb[0].mxu0 %v934
        %v1075 = vpop.f32.mrb[0].mxu0
        %v1076 = vadd.f32 %v959, %v1075
        %v1077 = vpop.f32.mrb[0].mxu0
        %v1078 = vpop.f32.mrb[0].mxu0
        %v1079 = vadd.f32 %v959, %v1078
        %v1080 = vpop.f32.mrb[0].mxu0
        %1081 = vmatprep.mubr.bf16.mxu0 0
        %1082 = vmatmul.mubr.bf16.gmra.mrb[0].mxu0 %v935
        %v1083 = vpop.f32.mrb[0].mxu0
        %v1084 = vadd.f32 %v959, %v1083
        %v1085 = vpop.f32.mrb[0].mxu0
        %v1086 = vpop.f32.mrb[0].mxu0
        %v1087 = vadd.f32 %v959, %v1086
        %v1088 = vpop.f32.mrb[0].mxu0
        %1089 = vmatprep.mubr.bf16.mxu0 0
        %1090 = vmatmul.mubr.bf16.gmra.mrb[0].mxu0 %v936
        %v1091 = vpop.f32.mrb[0].mxu0
        %v1092 = vadd.f32 %v959, %v1091
        %v1093 = vpop.f32.mrb[0].mxu0
        %v1094 = vpop.f32.mrb[0].mxu0
        %v1095 = vadd.f32 %v959, %v1094
        %v1096 = vpop.f32.mrb[0].mxu0
        %1097 = vmatprep.mubr.bf16.mxu0 0
        %1098 = vmatmul.mubr.bf16.gmra.mrb[0].mxu0 %v937
        %v1099 = vpop.f32.mrb[0].mxu0
        %v1100 = vadd.f32 %v959, %v1099
        %v1101 = vpop.f32.mrb[0].mxu0
        %v1102 = vpop.f32.mrb[0].mxu0
        %v1103 = vadd.f32 %v959, %v1102
        %v1104 = vpop.f32.mrb[0].mxu0
        %1105 = vdwg.mxu0
        %v1106 = vmax.f32 %v1044, 0.0
        %v1107 = vmax.f32 %v1047, 0.0
        %v1108 = vmax.f32 %v1052, 0.0
        %v1109 = vmax.f32 %v1055, 0.0
        %v1110 = vmax.f32 %v1060, 0.0
        %v1111 = vmax.f32 %v1063, 0.0
        %v1112 = vmax.f32 %v1068, 0.0
        %v1113 = vmax.f32 %v1071, 0.0
        %v1114 = vmax.f32 %v1076, 0.0
        %v1115 = vmax.f32 %v1079, 0.0
        %v1116 = vmax.f32 %v1084, 0.0
        %v1117 = vmax.f32 %v1087, 0.0
        %v1118 = vmax.f32 %v1092, 0.0
        %v1119 = vmax.f32 %v1095, 0.0
        %v1120 = vmax.f32 %v1100, 0.0
        %v1121 = vmax.f32 %v1103, 0.0
        %v1122 = vpack.c.bf16 %v1107, %v1106
        %v1123 = vpack.c.bf16 %v1109, %v1108
        %v1124 = vpack.c.bf16 %v1111, %v1110
        %v1125 = vpack.c.bf16 %v1113, %v1112
        %v1126 = vpack.c.bf16 %v1115, %v1114
        %v1127 = vpack.c.bf16 %v1117, %v1116
        %v1128 = vpack.c.bf16 %v1119, %v1118
        %v1129 = vpack.c.bf16 %v1121, %v1120
        %v1130 = vld [vmem:[%s533] sm:$0xf]
        %v1131 = vld [vmem:[%s533 + $0x4] sm:$0xf]
        %v1132 = vld [vmem:[%s533 + $0x8] sm:$0xf]
        %v1133 = vld [vmem:[%s533 + $0xc] sm:$0xf]
        %v1134 = vld [vmem:[%s533 + $0x10] sm:$0xf]
        %v1135 = vld [vmem:[%s533 + $0x14] sm:$0xf]
        %v1136 = vld [vmem:[%s533 + $0x18] sm:$0xf]
        %v1137 = vld [vmem:[%s533 + $0x1c] sm:$0xf]
        %v1138 = vld [vmem:[%s533 + $0x20] sm:$0xf]
        %v1139 = vld [vmem:[%s533 + $0x24] sm:$0xf]
        %v1140 = vld [vmem:[%s533 + $0x28] sm:$0xf]
        %v1141 = vld [vmem:[%s533 + $0x2c] sm:$0xf]
        %v1142 = vld [vmem:[%s533 + $0x30] sm:$0xf]
        %v1143 = vld [vmem:[%s533 + $0x34] sm:$0xf]
        %v1144 = vld [vmem:[%s533 + $0x38] sm:$0xf]
        %v1145 = vld [vmem:[%s533 + $0x3c] sm:$0xf]
        %v1146 = vld [vmem:[%s611] sm:$0x1]
        %v1148 = vlaneseq
        %v1149 = vshrl.u32 %v1148, 7
        %v1150 = vsub.s32 0, %v1149
        %v1151 = vrot.slane %v1146, %v1150
        %v1169 = vunpack.c.l.b16 %v1130
        %v1170 = vunpack.c.l.b16 %v1131
        %v1171 = vunpack.c.l.b16 %v1132
        %v1172 = vunpack.c.l.b16 %v1133
        %v1173 = vunpack.c.l.b16 %v1134
        %v1174 = vunpack.c.l.b16 %v1135
        %v1175 = vunpack.c.l.b16 %v1136
        %v1176 = vunpack.c.l.b16 %v1137
        %v1177 = vunpack.c.l.b16 %v1138
        %v1178 = vunpack.c.l.b16 %v1139
        %v1179 = vunpack.c.l.b16 %v1140
        %v1180 = vunpack.c.l.b16 %v1141
        %v1181 = vunpack.c.l.b16 %v1142
        %v1182 = vunpack.c.l.b16 %v1143
        %v1183 = vunpack.c.l.b16 %v1144
        %v1184 = vunpack.c.l.b16 %v1145
        %v1185 = vpack.c.b16 %v1170, %v1169
        %v1186 = vpack.c.b16 %v1172, %v1171
        %v1187 = vpack.c.b16 %v1174, %v1173
        %v1188 = vpack.c.b16 %v1176, %v1175
        %v1189 = vpack.c.b16 %v1178, %v1177
        %v1190 = vpack.c.b16 %v1180, %v1179
        %v1191 = vpack.c.b16 %v1182, %v1181
        %v1192 = vpack.c.b16 %v1184, %v1183
        %1201 = vmatprep.subr.bf16.mxu0 0
        %1202 = vmatpush1.bf16.msra.mxu0 %v1185
        %1203 = vmatprep.subr.bf16.mxu0 0
        %1204 = vmatpush1.bf16.msra.mxu0 %v1186
        %1205 = vmatprep.subr.bf16.mxu0 0
        %1206 = vmatpush1.bf16.msra.mxu0 %v1187
        %1207 = vmatprep.subr.bf16.mxu0 0
        %1208 = vmatpush1.bf16.msra.mxu0 %v1188
        %1209 = vmatprep.subr.bf16.mxu0 0
        %1210 = vmatpush1.bf16.msra.mxu0 %v1189
        %1211 = vmatprep.subr.bf16.mxu0 0
        %1212 = vmatpush1.bf16.msra.mxu0 %v1190
        %1213 = vmatprep.subr.bf16.mxu0 0
        %1214 = vmatpush1.bf16.msra.mxu0 %v1191
        %1215 = vmatprep.subr.bf16.mxu0 0
        %1216 = vmatpush1.bf16.msra.mxu0 %v1192
        %1217 = vmatprep.subr.bf16.mxu0 0
        %1218 = vmatpush1.bf16.msra.mxu0 0
        %1219 = vmatprep.subr.bf16.mxu0 0
        %1220 = vmatpush1.bf16.msra.mxu0 0
        %1221 = vmatprep.subr.bf16.mxu0 0
        %1222 = vmatpush1.bf16.msra.mxu0 0
        %1223 = vmatprep.subr.bf16.mxu0 0
        %1224 = vmatpush1.bf16.msra.mxu0 0
        %1225 = vmatprep.subr.bf16.mxu0 0
        %1226 = vmatpush1.bf16.msra.mxu0 0
        %1227 = vmatprep.subr.bf16.mxu0 0
        %1228 = vmatpush1.bf16.msra.mxu0 0
        %1229 = vmatprep.subr.bf16.mxu0 0
        %1230 = vmatpush1.bf16.msra.mxu0 0
        %1231 = vmatprep.subr.bf16.mxu0 0
        %1232 = vmatpush1.bf16.msra.mxu0 0
        %1233 = vmatprep.mubr.bf16.mxu0 0
        %1234 = vmatmul.mubr.bf16.gmra.mrb[0].mxu0 %v1122
        %v1235 = vpop.f32.mrb[0].mxu0
        %v1236 = vadd.f32 %v1151, %v1235
        %v1237 = vpop.f32.mrb[0].mxu0
        %v1238 = vpop.f32.mrb[0].mxu0
        %v1239 = vadd.f32 %v1151, %v1238
        %v1240 = vpop.f32.mrb[0].mxu0
        %1241 = vmatprep.mubr.bf16.mxu0 0
        %1242 = vmatmul.mubr.bf16.gmra.mrb[0].mxu0 %v1123
        %v1243 = vpop.f32.mrb[0].mxu0
        %v1244 = vadd.f32 %v1151, %v1243
        %v1245 = vpop.f32.mrb[0].mxu0
        %v1246 = vpop.f32.mrb[0].mxu0
        %v1247 = vadd.f32 %v1151, %v1246
        %v1248 = vpop.f32.mrb[0].mxu0
        %1249 = vmatprep.mubr.bf16.mxu0 0
        %1250 = vmatmul.mubr.bf16.gmra.mrb[0].mxu0 %v1124
        %v1251 = vpop.f32.mrb[0].mxu0
        %v1252 = vadd.f32 %v1151, %v1251
        %v1253 = vpop.f32.mrb[0].mxu0
        %v1254 = vpop.f32.mrb[0].mxu0
        %v1255 = vadd.f32 %v1151, %v1254
        %v1256 = vpop.f32.mrb[0].mxu0
        %1257 = vmatprep.mubr.bf16.mxu0 0
        %1258 = vmatmul.mubr.bf16.gmra.mrb[0].mxu0 %v1125
        %v1259 = vpop.f32.mrb[0].mxu0
        %v1260 = vadd.f32 %v1151, %v1259
        %v1261 = vpop.f32.mrb[0].mxu0
        %v1262 = vpop.f32.mrb[0].mxu0
        %v1263 = vadd.f32 %v1151, %v1262
        %v1264 = vpop.f32.mrb[0].mxu0
        %1265 = vmatprep.mubr.bf16.mxu0 0
        %1266 = vmatmul.mubr.bf16.gmra.mrb[0].mxu0 %v1126
        %v1267 = vpop.f32.mrb[0].mxu0
        %v1268 = vadd.f32 %v1151, %v1267
        %v1269 = vpop.f32.mrb[0].mxu0
        %v1270 = vpop.f32.mrb[0].mxu0
        %v1271 = vadd.f32 %v1151, %v1270
        %v1272 = vpop.f32.mrb[0].mxu0
        %1273 = vmatprep.mubr.bf16.mxu0 0
        %1274 = vmatmul.mubr.bf16.gmra.mrb[0].mxu0 %v1127
        %v1275 = vpop.f32.mrb[0].mxu0
        %v1276 = vadd.f32 %v1151, %v1275
        %v1277 = vpop.f32.mrb[0].mxu0
        %v1278 = vpop.f32.mrb[0].mxu0
        %v1279 = vadd.f32 %v1151, %v1278
        %v1280 = vpop.f32.mrb[0].mxu0
        %1281 = vmatprep.mubr.bf16.mxu0 0
        %1282 = vmatmul.mubr.bf16.gmra.mrb[0].mxu0 %v1128
        %v1283 = vpop.f32.mrb[0].mxu0
        %v1284 = vadd.f32 %v1151, %v1283
        %v1285 = vpop.f32.mrb[0].mxu0
        %v1286 = vpop.f32.mrb[0].mxu0
        %v1287 = vadd.f32 %v1151, %v1286
        %v1288 = vpop.f32.mrb[0].mxu0
        %1289 = vmatprep.mubr.bf16.mxu0 0
        %1290 = vmatmul.mubr.bf16.gmra.mrb[0].mxu0 %v1129
        %v1291 = vpop.f32.mrb[0].mxu0
        %v1292 = vadd.f32 %v1151, %v1291
        %v1293 = vpop.f32.mrb[0].mxu0
        %v1294 = vpop.f32.mrb[0].mxu0
        %v1295 = vadd.f32 %v1151, %v1294
        %v1296 = vpop.f32.mrb[0].mxu0
        %1297 = vdwg.mxu0
        %v1298 = vmax.f32 %v1236, 0.0
        %v1299 = vmax.f32 %v1239, 0.0
        %v1300 = vmax.f32 %v1244, 0.0
        %v1301 = vmax.f32 %v1247, 0.0
        %v1302 = vmax.f32 %v1252, 0.0
        %v1303 = vmax.f32 %v1255, 0.0
        %v1304 = vmax.f32 %v1260, 0.0
        %v1305 = vmax.f32 %v1263, 0.0
        %v1306 = vmax.f32 %v1268, 0.0
        %v1307 = vmax.f32 %v1271, 0.0
        %v1308 = vmax.f32 %v1276, 0.0
        %v1309 = vmax.f32 %v1279, 0.0
        %v1310 = vmax.f32 %v1284, 0.0
        %v1311 = vmax.f32 %v1287, 0.0
        %v1312 = vmax.f32 %v1292, 0.0
        %v1313 = vmax.f32 %v1295, 0.0
        %v1314 = vmul.f32 %v1298, %v745
        %v1315 = vmul.f32 %v1299, %v746
        %v1316 = vmul.f32 %v1300, %v747
        %v1317 = vmul.f32 %v1301, %v748
        %v1318 = vmul.f32 %v1302, %v749
        %v1319 = vmul.f32 %v1303, %v750
        %v1320 = vmul.f32 %v1304, %v751
        %v1321 = vmul.f32 %v1305, %v752
        %v1322 = vmul.f32 %v1306, %v753
        %v1323 = vmul.f32 %v1307, %v754
        %v1324 = vmul.f32 %v1308, %v755
        %v1325 = vmul.f32 %v1309, %v756
        %v1326 = vmul.f32 %v1310, %v757
        %v1327 = vmul.f32 %v1311, %v758
        %v1328 = vmul.f32 %v1312, %v759
        %v1329 = vmul.f32 %v1313, %v760
        %v1330 = vadd.f32 %v1314, %v1315
        %v1331 = vadd.f32 %v1330, %v1316
        %v1332 = vadd.f32 %v1331, %v1317
        %v1333 = vadd.f32 %v1332, %v1318
        %v1334 = vadd.f32 %v1333, %v1319
        %v1335 = vadd.f32 %v1334, %v1320
        %v1336 = vadd.f32 %v1335, %v1321
        %v1337 = vadd.f32 %v1336, %v1322
        %v1338 = vadd.f32 %v1337, %v1323
        %v1339 = vadd.f32 %v1338, %v1324
        %v1340 = vadd.f32 %v1339, %v1325
        %v1341 = vadd.f32 %v1340, %v1326
        %v1342 = vadd.f32 %v1341, %v1327
        %v1343 = vadd.f32 %v1342, %v1328
        %v1344 = vadd.f32 %v1343, %v1329
        %v1345 = vrot.slane %v1344, 4
        %v1346 = vadd.f32 %v1344, %v1345
        %v1347 = vrot.slane %v1346, 2
        %v1348 = vadd.f32 %v1346, %v1347
        %v1349 = vrot.slane %v1348, 1
        %v1350 = vadd.f32 %v1348, %v1349
        %v1351 = vmul.f32 %v1350, 0.083333336
        %v1352 = vmul.f32 %v1314, %v1314
        %v1353 = vmul.f32 %v1315, %v1315
        %v1354 = vmul.f32 %v1316, %v1316
        %v1355 = vmul.f32 %v1317, %v1317
        %v1356 = vmul.f32 %v1318, %v1318
        %v1357 = vmul.f32 %v1319, %v1319
        %v1358 = vmul.f32 %v1320, %v1320
        %v1359 = vmul.f32 %v1321, %v1321
        %v1360 = vmul.f32 %v1322, %v1322
        %v1361 = vmul.f32 %v1323, %v1323
        %v1362 = vmul.f32 %v1324, %v1324
        %v1363 = vmul.f32 %v1325, %v1325
        %v1364 = vmul.f32 %v1326, %v1326
        %v1365 = vmul.f32 %v1327, %v1327
        %v1366 = vmul.f32 %v1328, %v1328
        %v1367 = vmul.f32 %v1329, %v1329
        %v1368 = vadd.f32 %v1352, %v1353
        %v1369 = vadd.f32 %v1368, %v1354
        %v1370 = vadd.f32 %v1369, %v1355
        %v1371 = vadd.f32 %v1370, %v1356
        %v1372 = vadd.f32 %v1371, %v1357
        %v1373 = vadd.f32 %v1372, %v1358
        %v1374 = vadd.f32 %v1373, %v1359
        %v1375 = vadd.f32 %v1374, %v1360
        %v1376 = vadd.f32 %v1375, %v1361
        %v1377 = vadd.f32 %v1376, %v1362
        %v1378 = vadd.f32 %v1377, %v1363
        %v1379 = vadd.f32 %v1378, %v1364
        %v1380 = vadd.f32 %v1379, %v1365
        %v1381 = vadd.f32 %v1380, %v1366
        %v1382 = vadd.f32 %v1381, %v1367
        %v1383 = vrot.slane %v1382, 4
        %v1384 = vadd.f32 %v1382, %v1383
        %v1385 = vrot.slane %v1384, 2
        %v1386 = vadd.f32 %v1384, %v1385
        %v1387 = vrot.slane %v1386, 1
        %v1388 = vadd.f32 %v1386, %v1387
        %v1389 = vmul.f32 %v1388, 0.083333336
        %v1390 = vmul.f32 %v1351, %v1351
        %v1391 = vsub.f32 %v1389, %v1390
        %v1392 = vmax.f32 %v1391, 0.0
        %v1393 = vadd.f32 %v1392, 1e-05
        %v1394 = vrsqrt.pop %v1393
        %v1395 = vsub.f32 %v1298, %v1351
        %v1396 = vsub.f32 %v1299, %v1351
        %v1397 = vsub.f32 %v1300, %v1351
        %v1398 = vsub.f32 %v1301, %v1351
        %v1399 = vsub.f32 %v1302, %v1351
        %v1400 = vsub.f32 %v1303, %v1351
        %v1401 = vsub.f32 %v1304, %v1351
        %v1402 = vsub.f32 %v1305, %v1351
        %v1403 = vsub.f32 %v1306, %v1351
        %v1404 = vsub.f32 %v1307, %v1351
        %v1405 = vsub.f32 %v1308, %v1351
        %v1406 = vsub.f32 %v1309, %v1351
        %v1407 = vsub.f32 %v1310, %v1351
        %v1408 = vsub.f32 %v1311, %v1351
        %v1409 = vsub.f32 %v1312, %v1351
        %v1410 = vsub.f32 %v1313, %v1351
        %v1411 = vmul.f32 %v1395, %v1394
        %v1412 = vmul.f32 %v1396, %v1394
        %v1413 = vmul.f32 %v1397, %v1394
        %v1414 = vmul.f32 %v1398, %v1394
        %v1415 = vmul.f32 %v1399, %v1394
        %v1416 = vmul.f32 %v1400, %v1394
        %v1417 = vmul.f32 %v1401, %v1394
        %v1418 = vmul.f32 %v1402, %v1394
        %v1419 = vmul.f32 %v1403, %v1394
        %v1420 = vmul.f32 %v1404, %v1394
        %v1421 = vmul.f32 %v1405, %v1394
        %v1422 = vmul.f32 %v1406, %v1394
        %v1423 = vmul.f32 %v1407, %v1394
        %v1424 = vmul.f32 %v1408, %v1394
        %v1425 = vmul.f32 %v1409, %v1394
        %v1426 = vmul.f32 %v1410, %v1394
        %v1427 = vld [vmem:[%s614] sm:$0x1]
        %v1429 = vlaneseq
        %v1430 = vshrl.u32 %v1429, 7
        %v1431 = vsub.s32 0, %v1430
        %v1432 = vrot.slane %v1427, %v1431
        %v1434 = vmul.f32 %v1411, %v1432
        %v1435 = vmul.f32 %v1412, %v1432
        %v1436 = vmul.f32 %v1413, %v1432
        %v1437 = vmul.f32 %v1414, %v1432
        %v1438 = vmul.f32 %v1415, %v1432
        %v1439 = vmul.f32 %v1416, %v1432
        %v1440 = vmul.f32 %v1417, %v1432
        %v1441 = vmul.f32 %v1418, %v1432
        %v1442 = vmul.f32 %v1419, %v1432
        %v1443 = vmul.f32 %v1420, %v1432
        %v1444 = vmul.f32 %v1421, %v1432
        %v1445 = vmul.f32 %v1422, %v1432
        %v1446 = vmul.f32 %v1423, %v1432
        %v1447 = vmul.f32 %v1424, %v1432
        %v1448 = vmul.f32 %v1425, %v1432
        %v1449 = vmul.f32 %v1426, %v1432
        %v1450 = vld [vmem:[%s617] sm:$0x1]
        %v1452 = vlaneseq
        %v1453 = vshrl.u32 %v1452, 7
        %v1454 = vsub.s32 0, %v1453
        %v1455 = vrot.slane %v1450, %v1454
        %v1457 = vadd.f32 %v1434, %v1455
        %v1458 = vadd.f32 %v1435, %v1455
        %v1459 = vadd.f32 %v1436, %v1455
        %v1460 = vadd.f32 %v1437, %v1455
        %v1461 = vadd.f32 %v1438, %v1455
        %v1462 = vadd.f32 %v1439, %v1455
        %v1463 = vadd.f32 %v1440, %v1455
        %v1464 = vadd.f32 %v1441, %v1455
        %v1465 = vadd.f32 %v1442, %v1455
        %v1466 = vadd.f32 %v1443, %v1455
        %v1467 = vadd.f32 %v1444, %v1455
        %v1468 = vadd.f32 %v1445, %v1455
        %v1469 = vadd.f32 %v1446, %v1455
        %v1470 = vadd.f32 %v1447, %v1455
        %v1471 = vadd.f32 %v1448, %v1455
        %v1472 = vadd.f32 %v1449, %v1455
        %v1473 = vmul.f32 %v1457, %v745
        %v1474 = vmul.f32 %v1458, %v746
        %v1475 = vmul.f32 %v1459, %v747
        %v1476 = vmul.f32 %v1460, %v748
        %v1477 = vmul.f32 %v1461, %v749
        %v1478 = vmul.f32 %v1462, %v750
        %v1479 = vmul.f32 %v1463, %v751
        %v1480 = vmul.f32 %v1464, %v752
        %v1481 = vmul.f32 %v1465, %v753
        %v1482 = vmul.f32 %v1466, %v754
        %v1483 = vmul.f32 %v1467, %v755
        %v1484 = vmul.f32 %v1468, %v756
        %v1485 = vmul.f32 %v1469, %v757
        %v1486 = vmul.f32 %v1470, %v758
        %v1487 = vmul.f32 %v1471, %v759
        %v1488 = vmul.f32 %v1472, %v760
        %v1489 = vpack.c.bf16 %v1474, %v1473
        %v1490 = vpack.c.bf16 %v1476, %v1475
        %v1491 = vpack.c.bf16 %v1478, %v1477
        %v1492 = vpack.c.bf16 %v1480, %v1479
        %v1493 = vpack.c.bf16 %v1482, %v1481
        %v1494 = vpack.c.bf16 %v1484, %v1483
        %v1495 = vpack.c.bf16 %v1486, %v1485
        %v1496 = vpack.c.bf16 %v1488, %v1487
        %v1497 = vld [vmem:[%s8] sm:$0xf]
        %1498 = vmatprep.subr.bf16.mxu0 0
        %1499 = vmatpush1.bf16.msra.mxu0 %v1489
        %1500 = vmatprep.subr.bf16.mxu0 0
        %1501 = vmatpush1.bf16.msra.mxu0 %v1490
        %1502 = vmatprep.subr.bf16.mxu0 0
        %1503 = vmatpush1.bf16.msra.mxu0 %v1491
        %1504 = vmatprep.subr.bf16.mxu0 0
        %1505 = vmatpush1.bf16.msra.mxu0 %v1492
        %1506 = vmatprep.subr.bf16.mxu0 0
        %1507 = vmatpush1.bf16.msra.mxu0 %v1493
        %1508 = vmatprep.subr.bf16.mxu0 0
        %1509 = vmatpush1.bf16.msra.mxu0 %v1494
        %1510 = vmatprep.subr.bf16.mxu0 0
        %1511 = vmatpush1.bf16.msra.mxu0 %v1495
        %1512 = vmatprep.subr.bf16.mxu0 0
        %1513 = vmatpush1.bf16.msra.mxu0 %v1496
        %1514 = vmatprep.subr.bf16.mxu0 0
        %1515 = vmatpush1.bf16.msra.mxu0 0
        %1516 = vmatprep.subr.bf16.mxu0 0
        %1517 = vmatpush1.bf16.msra.mxu0 0
        %1518 = vmatprep.subr.bf16.mxu0 0
        %1519 = vmatpush1.bf16.msra.mxu0 0
        %1520 = vmatprep.subr.bf16.mxu0 0
        %1521 = vmatpush1.bf16.msra.mxu0 0
        %1522 = vmatprep.subr.bf16.mxu0 0
        %1523 = vmatpush1.bf16.msra.mxu0 0
        %1524 = vmatprep.subr.bf16.mxu0 0
        %1525 = vmatpush1.bf16.msra.mxu0 0
        %1526 = vmatprep.subr.bf16.mxu0 0
        %1527 = vmatpush1.bf16.msra.mxu0 0
        %1528 = vmatprep.subr.bf16.mxu0 0
        %1529 = vmatpush1.bf16.msra.mxu0 0
        %1530 = vmatprep.mubr.bf16.mxu0 0
        %1531 = vmatmul.mubr.bf16.gmra.mrb[0].mxu0 %v1497
        %v1532 = vpop.f32.mrb[0].mxu0
        %v1533 = vadd.f32 0.0, %v1532
        %v1534 = vpop.f32.mrb[0].mxu0
        %v1535 = vpop.f32.mrb[0].mxu0
        %v1536 = vpop.f32.mrb[0].mxu0
        %1537 = vdwg.mxu0
        %v1538 = vld [vmem:[#allocation3] sm:$0xff]
        %v1539 = vpack.c.bf16 %v1533, %v1533
        %v1540 = vld [vmem:[%s542] sm:$0xf]
        %v1541 = vld [vmem:[%s542 + $0x4] sm:$0xf]
        %v1542 = vld [vmem:[%s542 + $0x8] sm:$0xf]
        %v1543 = vld [vmem:[%s542 + $0xc] sm:$0xf]
        %v1544 = vld [vmem:[%s542 + $0x10] sm:$0xf]
        %v1545 = vld [vmem:[%s542 + $0x14] sm:$0xf]
        %v1546 = vld [vmem:[%s542 + $0x18] sm:$0xf]
        %v1547 = vld [vmem:[%s542 + $0x1c] sm:$0xf]
        %v1548 = vld [vmem:[%s542 + $0x20] sm:$0xf]
        %v1549 = vld [vmem:[%s542 + $0x24] sm:$0xf]
        %v1550 = vld [vmem:[%s542 + $0x28] sm:$0xf]
        %v1551 = vld [vmem:[%s542 + $0x2c] sm:$0xf]
        %v1552 = vld [vmem:[%s542 + $0x30] sm:$0xf]
        %v1553 = vld [vmem:[%s542 + $0x34] sm:$0xf]
        %v1554 = vld [vmem:[%s542 + $0x38] sm:$0xf]
        %v1555 = vld [vmem:[%s542 + $0x3c] sm:$0xf]
        %v1572 = vunpack.c.l.b16 %v1540
        %v1573 = vunpack.c.l.b16 %v1541
        %v1574 = vunpack.c.l.b16 %v1542
        %v1575 = vunpack.c.l.b16 %v1543
        %v1576 = vunpack.c.l.b16 %v1544
        %v1577 = vunpack.c.l.b16 %v1545
        %v1578 = vunpack.c.l.b16 %v1546
        %v1579 = vunpack.c.l.b16 %v1547
        %v1580 = vunpack.c.l.b16 %v1548
        %v1581 = vunpack.c.l.b16 %v1549
        %v1582 = vunpack.c.l.b16 %v1550
        %v1583 = vunpack.c.l.b16 %v1551
        %v1584 = vunpack.c.l.b16 %v1552
        %v1585 = vunpack.c.l.b16 %v1553
        %v1586 = vunpack.c.l.b16 %v1554
        %v1587 = vunpack.c.l.b16 %v1555
        %v1588 = vpack.c.b16 %v1573, %v1572
        %v1589 = vpack.c.b16 %v1575, %v1574
        %v1590 = vpack.c.b16 %v1577, %v1576
        %v1591 = vpack.c.b16 %v1579, %v1578
        %v1592 = vpack.c.b16 %v1581, %v1580
        %v1593 = vpack.c.b16 %v1583, %v1582
        %v1594 = vpack.c.b16 %v1585, %v1584
        %v1595 = vpack.c.b16 %v1587, %v1586
        %1604 = vmatprep.subr.bf16.mxu0 0
        %1605 = vmatpush1.bf16.msra.mxu0 %v1588
        %1606 = vmatprep.subr.bf16.mxu0 0
        %1607 = vmatpush1.bf16.msra.mxu0 %v1589
        %1608 = vmatprep.subr.bf16.mxu0 0
        %1609 = vmatpush1.bf16.msra.mxu0 %v1590
        %1610 = vmatprep.subr.bf16.mxu0 0
        %1611 = vmatpush1.bf16.msra.mxu0 %v1591
        %1612 = vmatprep.subr.bf16.mxu0 0
        %1613 = vmatpush1.bf16.msra.mxu0 %v1592
        %1614 = vmatprep.subr.bf16.mxu0 0
        %1615 = vmatpush1.bf16.msra.mxu0 %v1593
        %1616 = vmatprep.subr.bf16.mxu0 0
        %1617 = vmatpush1.bf16.msra.mxu0 %v1594
        %1618 = vmatprep.subr.bf16.mxu0 0
        %1619 = vmatpush1.bf16.msra.mxu0 %v1595
        %1620 = vmatprep.subr.bf16.mxu0 0
        %1621 = vmatpush1.bf16.msra.mxu0 0
        %1622 = vmatprep.subr.bf16.mxu0 0
        %1623 = vmatpush1.bf16.msra.mxu0 0
        %1624 = vmatprep.subr.bf16.mxu0 0
        %1625 = vmatpush1.bf16.msra.mxu0 0
        %1626 = vmatprep.subr.bf16.mxu0 0
        %1627 = vmatpush1.bf16.msra.mxu0 0
        %1628 = vmatprep.subr.bf16.mxu0 0
        %1629 = vmatpush1.bf16.msra.mxu0 0
        %1630 = vmatprep.subr.bf16.mxu0 0
        %1631 = vmatpush1.bf16.msra.mxu0 0
        %1632 = vmatprep.subr.bf16.mxu0 0
        %1633 = vmatpush1.bf16.msra.mxu0 0
        %1634 = vmatprep.subr.bf16.mxu0 0
        %1635 = vmatpush1.bf16.msra.mxu0 0
        %1636 = vmatprep.mubr.bf16.mxu0 0
        %1637 = vmatmul.mubr.bf16.gmra.mrb[0].mxu0 %v1539
        %v1638 = vpop.f32.mrb[0].mxu0
        %v1639 = vadd.f32 0.0, %v1638
        %v1640 = vpop.f32.mrb[0].mxu0
        %v1641 = vpop.f32.mrb[0].mxu0
        %v1642 = vpop.f32.mrb[0].mxu0
        %1643 = vdwg.mxu0
        %v1644 = vadd.f32 %v1538, %v1639
        %1645 = vst [vmem:[#allocation3] sm:$0xff] %v1644
        %1646 = vst [vmem:[#allocation2] sm:$0xff] %v1489
        %1647 = vst [vmem:[#allocation2 + $0x8] sm:$0xff] %v1490
        %1648 = vst [vmem:[#allocation2 + $0x10] sm:$0xff] %v1491
        %1649 = vst [vmem:[#allocation2 + $0x18] sm:$0xff] %v1492
        %1650 = vst [vmem:[#allocation2 + $0x20] sm:$0xff] %v1493
        %1651 = vst [vmem:[#allocation2 + $0x28] sm:$0xff] %v1494
        %1652 = vst [vmem:[#allocation2 + $0x30] sm:$0xff] %v1495
        %1653 = vst [vmem:[#allocation2 + $0x38] sm:$0xff] %v1496
        %p1654 = scmp.eq.s32.totalorder %s27, 2
        // Predicated region
        $region101: #{tpu_custom_call.1} parent=71 // pred_check
          %p1655 = pneg %p1654
        $region102: #{tpu_custom_call.1} parent=71 // pred_check_branch
          %1657 = sbr.rel (%p1655) target = $region104
        $region103: #{tpu_custom_call.1} parent=71 // pred_region
          %v1658 = vld [vmem:[#allocation3] sm:$0xff]
          %v1659 = vld [vmem:[%s10] sm:$0x1]
          %v1661 = vlaneseq
          %v1662 = vshrl.u32 %v1661, 7
          %v1663 = vsub.s32 0, %v1662
          %v1664 = vrot.slane %v1659, %v1663
          %v1666 = vadd.f32 %v1658, %v1664
          %v1667 = vmax.f32 %v1666, 0.0
          %v1668 = vpack.c.bf16 %v1667, %v1667
          %v1669 = vld [vmem:[#allocation12] sm:$0xf]
          %v1670 = vld [vmem:[#allocation12 + $0x4] sm:$0xf]
          %v1671 = vld [vmem:[#allocation12 + $0x8] sm:$0xf]
          %v1672 = vld [vmem:[#allocation12 + $0xc] sm:$0xf]
          %v1673 = vld [vmem:[#allocation12 + $0x10] sm:$0xf]
          %v1674 = vld [vmem:[#allocation12 + $0x14] sm:$0xf]
          %v1675 = vld [vmem:[#allocation12 + $0x18] sm:$0xf]
          %v1676 = vld [vmem:[#allocation12 + $0x1c] sm:$0xf]
          %v1677 = vld [vmem:[#allocation12 + $0x20] sm:$0xf]
          %v1678 = vld [vmem:[#allocation12 + $0x24] sm:$0xf]
          %v1679 = vld [vmem:[#allocation12 + $0x28] sm:$0xf]
          %v1680 = vld [vmem:[#allocation12 + $0x2c] sm:$0xf]
          %v1681 = vld [vmem:[#allocation12 + $0x30] sm:$0xf]
          %v1682 = vld [vmem:[#allocation12 + $0x34] sm:$0xf]
          %v1683 = vld [vmem:[#allocation12 + $0x38] sm:$0xf]
          %v1684 = vld [vmem:[#allocation12 + $0x3c] sm:$0xf]
          %v1685 = vld [vmem:[%s12] sm:$0x1]
          %v1687 = vlaneseq
          %v1688 = vshrl.u32 %v1687, 7
          %v1689 = vsub.s32 0, %v1688
          %v1690 = vrot.slane %v1685, %v1689
          %v1708 = vunpack.c.l.b16 %v1669
          %v1709 = vunpack.c.l.b16 %v1670
          %v1710 = vunpack.c.l.b16 %v1671
          %v1711 = vunpack.c.l.b16 %v1672
          %v1712 = vunpack.c.l.b16 %v1673
          %v1713 = vunpack.c.l.b16 %v1674
          %v1714 = vunpack.c.l.b16 %v1675
          %v1715 = vunpack.c.l.b16 %v1676
          %v1716 = vunpack.c.l.b16 %v1677
          %v1717 = vunpack.c.l.b16 %v1678
          %v1718 = vunpack.c.l.b16 %v1679
          %v1719 = vunpack.c.l.b16 %v1680
          %v1720 = vunpack.c.l.b16 %v1681
          %v1721 = vunpack.c.l.b16 %v1682
          %v1722 = vunpack.c.l.b16 %v1683
          %v1723 = vunpack.c.l.b16 %v1684
          %v1724 = vpack.c.b16 %v1709, %v1708
          %v1725 = vpack.c.b16 %v1711, %v1710
          %v1726 = vpack.c.b16 %v1713, %v1712
          %v1727 = vpack.c.b16 %v1715, %v1714
          %v1728 = vpack.c.b16 %v1717, %v1716
          %v1729 = vpack.c.b16 %v1719, %v1718
          %v1730 = vpack.c.b16 %v1721, %v1720
          %v1731 = vpack.c.b16 %v1723, %v1722
          %1740 = vmatprep.subr.bf16.mxu0 0
          %1741 = vmatpush1.bf16.msra.mxu0 %v1724
          %1742 = vmatprep.subr.bf16.mxu0 0
          %1743 = vmatpush1.bf16.msra.mxu0 %v1725
          %1744 = vmatprep.subr.bf16.mxu0 0
          %1745 = vmatpush1.bf16.msra.mxu0 %v1726
          %1746 = vmatprep.subr.bf16.mxu0 0
          %1747 = vmatpush1.bf16.msra.mxu0 %v1727
          %1748 = vmatprep.subr.bf16.mxu0 0
          %1749 = vmatpush1.bf16.msra.mxu0 %v1728
          %1750 = vmatprep.subr.bf16.mxu0 0
          %1751 = vmatpush1.bf16.msra.mxu0 %v1729
          %1752 = vmatprep.subr.bf16.mxu0 0
          %1753 = vmatpush1.bf16.msra.mxu0 %v1730
          %1754 = vmatprep.subr.bf16.mxu0 0
          %1755 = vmatpush1.bf16.msra.mxu0 %v1731
          %1756 = vmatprep.subr.bf16.mxu0 0
          %1757 = vmatpush1.bf16.msra.mxu0 0
          %1758 = vmatprep.subr.bf16.mxu0 0
          %1759 = vmatpush1.bf16.msra.mxu0 0
          %1760 = vmatprep.subr.bf16.mxu0 0
          %1761 = vmatpush1.bf16.msra.mxu0 0
          %1762 = vmatprep.subr.bf16.mxu0 0
          %1763 = vmatpush1.bf16.msra.mxu0 0
          %1764 = vmatprep.subr.bf16.mxu0 0
          %1765 = vmatpush1.bf16.msra.mxu0 0
          %1766 = vmatprep.subr.bf16.mxu0 0
          %1767 = vmatpush1.bf16.msra.mxu0 0
          %1768 = vmatprep.subr.bf16.mxu0 0
          %1769 = vmatpush1.bf16.msra.mxu0 0
          %1770 = vmatprep.subr.bf16.mxu0 0
          %1771 = vmatpush1.bf16.msra.mxu0 0
          %1772 = vmatprep.mubr.bf16.mxu0 0
          %1773 = vmatmul.mubr.bf16.gmra.mrb[0].mxu0 %v1668
          %v1774 = vpop.f32.mrb[0].mxu0
          %v1775 = vadd.f32 %v1690, %v1774
          %v1776 = vpop.f32.mrb[0].mxu0
          %v1777 = vpop.f32.mrb[0].mxu0
          %v1778 = vpop.f32.mrb[0].mxu0
          %1779 = vdwg.mxu0
          %1780 = vst [vmem:[#allocation13] sm:$0xff] %v1775
        $region104: #{tpu_custom_call.1} parent=71 // pred_fallthru
          _
        // Predicated region
        $region105: #{tpu_custom_call.1} parent=71 // pred_check
          %p1781 = pneg %p348
        $region106: #{tpu_custom_call.1} parent=71 // pred_check_branch
          %1783 = sbr.rel (%p1781) target = $region108
        $region107: #{tpu_custom_call.1} parent=71 // pred_region
          %s1785 = ssub.s32 128, 128
          %1786 = vsyncadd [#allocation6], %s1785
          %s1788 = sshll.u32 [#allocation13], 4
          %s1789 = int_to_ptr.vmem [resolvable:$true] %s1788
          %1791 = dma.vmem_to_hbm [thread:$0]  %s1789, 128, %s13, [#allocation6]
        $region108: #{tpu_custom_call.1} parent=71 // pred_fallthru
          _
        // Predicated region
        $region109: #{tpu_custom_call.1} parent=71 // pred_check
          %p1792 = pneg %p348
        $region110: #{tpu_custom_call.1} parent=71 // pred_check_branch
          %1794 = sbr.rel (%p1792) target = $region112
        $region111: #{tpu_custom_call.1} parent=71 // pred_region
          %1795 = dma.done [#allocation6], 128
        $region112: #{tpu_custom_call.1} parent=71 // pred_fallthru
          _
      $region72: #{tpu_custom_call.1} parent=5 // pred_fallthru
        _
      %p1796 = scmp.le.s32.totalorder 2, %s22
      // Predicated region
      $region113: #{tpu_custom_call.1} parent=5 // pred_check
        %p1797 = pneg %p1796
      $region114: #{tpu_custom_call.1} parent=5 // pred_check_branch
        %1799 = sbr.rel (%p1797) target = $region116
      $region115: #{tpu_custom_call.1} parent=5 // pred_region
        %s1800 = ssub.s32 %s22, 2
      $region116: #{tpu_custom_call.1} parent=5 // pred_fallthru
        _
    $region6: #{tpu_custom_call.1} parent=1 // loop_footer
      %s26 = sadd.s32 1, %s22
    $region7: #{tpu_custom_call.1} parent=1 // loop_footer_branch
      %21 = sbr.rel target = $region3
    $region8: #{tpu_custom_call.1} parent=1 // loop_exit
      _
    %1801 = vsyncpa [#allocation5], 1
    %s1802 = scalar_lea.sflag [#allocation5], 1
    %1803 = vsyncpa %s1802, 1
    %1804 = vsyncpa [#allocation8], 1
    %1805 = vsyncpa [#allocation6], 1
    %s1806 = scalar_lea.sflag [#allocation6], 1
    %1807 = vsyncpa %s1806, 1

</llo_original>
